<compile_context>
chip_gen: v7x
topology: tpu7x:2x2x1
jax: 0.10.0
libtpu: 0.0.40
codegen_flags: <defaults>
</compile_context>

<pallas_src>
import numpy as np
import jax
import jax.numpy as jnp
from jax import lax
from jax.experimental import pallas as pl
from jax.experimental.pallas import tpu as pltpu

NUM_CLASSES = 3


# ------------------------------ Pallas kernel ------------------------------

def _lenet_kernel(x_ref, w1r_ref, b1_ref, w2t_ref, b2_ref, w3_ref, fb1_ref,
                  fw2_ref, fb2_ref, fw3_ref, fb3_ref, out_ref):
    """One batch tile of the whole LeNet forward, entirely in VMEM/vregs.

    x_ref  : (TB, 2, 24, 32) f32   raw input, height pool-phase split:
                                   x_ref[n, c, a, w] = image[n, 2a + c, w] (zero pad).
    w1r_ref: (160, 144) bf16       conv1 width-Toeplitz weight
                                   [ki*32 + w_in, q*72 + b*6 + co].
    b1_ref : (1, 1, 72)  f32       conv1 bias tiled over b.
    w2t_ref: (72, 640)   bf16      conv2 width-Toeplitz weight
                                   [b_in*6 + cin, ki*128 + v*16 + cout].
    b2_ref : (1, 1, 128) f32       conv2 bias tiled over v.
    w3_ref : (448, 120)  bf16      fc1 weight with pool2 even-(row,col) selection and
                                   the torch NCHW flatten order baked in.
    """
    f32, bf16 = jnp.float32, jnp.bfloat16
    tb = out_ref.shape[0]

    x = x_ref[...]                                      # (TB, 2, 24, 32)
    xp = (x[:, 0], x[:, 1])                             # per pool-row-phase planes

    # ---- conv1 (+ pool1 + bias + ReLU): ONE matmul -------------------------
    # LHS rows are conv1 output rows of one pool-row phase; K stacks the 5 input
    # rows (32 cols each) touched by the 5x5 window.  Pool column phase lives in N.
    def build_rows(p):
        slabs = []
        for ki in range(5):
            c = (p + ki) & 1
            o = (p + ki) >> 1
            slabs.append(xp[c][:, o:o + 16, :])         # (TB, 16, 32)
        return jnp.concatenate(slabs, axis=-1)          # (TB, 16, 160)

    l1 = jnp.concatenate([build_rows(0), build_rows(1)], axis=0)   # (2TB, 16, 160)
    r1 = jnp.dot(l1.reshape(2 * tb * 16, 160).astype(bf16), w1r_ref[...],
                 preferred_element_type=f32)            # (2TB*16, 144)
    r1 = r1.reshape(2, tb, 16, 144)
    m1 = jnp.maximum(r1[0], r1[1])                      # max over pool row phase
    m1 = jnp.maximum(m1[:, :, 0:72], m1[:, :, 72:144])  # max over pool col phase
    pooled1 = jnp.maximum(m1 + b1_ref[...], 0.0)        # (TB, 16, 72); rows >=12 unused

    # ---- conv2 (+ bias + ReLU): ONE matmul + 5 lane-aligned shifted adds ----
    p2 = jnp.dot(pooled1.astype(bf16).reshape(tb * 16, 72), w2t_ref[...],
                 preferred_element_type=f32)            # (TB*16, 640)
    p2 = p2.reshape(tb, 16, 640)
    acc = p2[:, 0:8, 0:128]
    for ki in range(1, 5):
        acc = acc + p2[:, ki:ki + 8, ki * 128:(ki + 1) * 128]
    y2 = jnp.maximum(acc + b2_ref[...], 0.0)            # (TB, 8, 128); lane = v*16+cout

    # ---- pool2 + flatten + FC1: two element-wise maxes + ONE matmul ---------
    m_u = jnp.maximum(y2[:, 0:7, :], y2[:, 1:8, :])             # rows u, u+1
    m_uv = jnp.maximum(m_u[:, :, 0:112], m_u[:, :, 16:128])     # cols v, v+1
    l3 = jnp.concatenate([m_uv[:, 2 * e, :] for e in range(4)], axis=-1)  # (TB, 448)
    h1 = jnp.maximum(
        jnp.dot(l3.astype(bf16), w3_ref[...], preferred_element_type=f32)
        + fb1_ref[...], 0.0)                            # (TB, 120)

    # ---- FC2 + ReLU, FC3 ----------------------------------------------------
    h2 = jnp.maximum(
        jnp.dot(h1.astype(bf16), fw2_ref[...], preferred_element_type=f32)
        + fb2_ref[...], 0.0)                            # (TB, 84)
    logits = (jnp.dot(h2.astype(bf16), fw3_ref[...], preferred_element_type=f32)
              + fb3_ref[...])                           # (TB, NUM_CLASSES)
    out_ref[...] = logits.astype(out_ref.dtype)


# ------------------------------ Wrapper glue -------------------------------

def _ceil_to(v, m):
    return ((v + m - 1) // m) * m


def _phase_split_input(x_nchw, n_pad):
    """(N,1,28,28) -> (N_pad, 2, 24, 32) f32 with x[n, c, a, w] = image[n, 2a+c, w]."""
    n = x_nchw.shape[0]
    x = x_nchw.reshape(n, 28, 28).astype(jnp.float32)
    x = jnp.pad(x, ((0, n_pad - n), (0, 20), (0, 4)))   # H 28->48, W 28->32
    x = x.reshape(n_pad, 24, 2, 32)                     # h = 2a + c
    # TODO(synk): this stride-2 de-interleave (one cheap XLA transpose on 1x data)
    # stays in the wrapper; an in-kernel stride-2 sublane gather has no clean
    # Pallas/Mosaic equivalent.
    return jnp.transpose(x, (0, 2, 1, 3))               # (N_pad, 2, 24, 32)


def lenet_forward(x_nchw, prepared, *, batch_tile=128):
    (w1r, b1t, w2t, b2t, w3, fb1, fw2t, fb2, fw3t, fb3) = prepared
    n = x_nchw.shape[0]
    # Batch tile: multiple of 8, ~0.12 MiB live/sample incl. the 640-lane conv2 slab,
    # so 128 rows ~= 15 MiB worst case -- fits every generation with headroom.
    tb = min(batch_tile, _ceil_to(n, 8))
    n_pad = _ceil_to(n, tb)
    xs = _phase_split_input(x_nchw, n_pad)

    def const_spec(a):                                   # weights: fetched once,
        nd = a.ndim                                      # VMEM-resident across steps
        return pl.BlockSpec(a.shape, lambda i, _nd=nd: (0,) * _nd)

    weight_args = (w1r, b1t, w2t, b2t, w3, fb1, fw2t, fb2, fw3t, fb3)
    out = pl.pallas_call(
        _lenet_kernel,
        out_shape=jax.ShapeDtypeStruct((n_pad, NUM_CLASSES), jnp.float32),
        grid=(n_pad // tb,),
        in_specs=[pl.BlockSpec((tb, 2, 24, 32), lambda i: (i, 0, 0, 0))]
                 + [const_spec(a) for a in weight_args],
        out_specs=pl.BlockSpec((tb, NUM_CLASSES), lambda i: (i, 0)),
        compiler_params=pltpu.CompilerParams(
            dimension_semantics=("parallel",),
            vmem_limit_bytes=48 * 1024 * 1024),
    )(xs, *weight_args)
    return out[:n]


# ---------------------- One-time parameter preprocessing --------------------

def prepare_params(params):
    """Hoist all weight restructuring out of the forward path (runs once, on host)."""
    (w1, b1), (w2, b2), (fw1, fb1), (fw2, fb2), (fw3, fb3) = [
        [np.asarray(t, np.float32) for t in layer] for layer in params]

    # conv1: width-Toeplitz; kernel rows stacked along K, pool column phase along N.
    # W1R[ki*32 + w_in, q*72 + b*6 + co] = w1[co, 0, ki, w_in - (2b + q)]
    w1r = np.zeros((160, 144), np.float32)
    for ki in range(5):
        for kj in range(5):
            for q in range(2):
                for b in range(12):
                    w_in = 2 * b + q + kj
                    w1r[ki * 32 + w_in,
                        q * 72 + b * 6:q * 72 + (b + 1) * 6] = w1[:, 0, ki, kj]
    b1t = np.tile(b1, 12).reshape(1, 1, 72)

    # conv2: width-Toeplitz over (kj, cin); kernel rows ki stacked along N in
    # 128-lane blocks so the in-kernel row-shifted adds stay lane-group aligned.
    # W2T[b_in*6 + cin, ki*128 + v*16 + cout] = w2[cout, cin, ki, b_in - v]
    w2t = np.zeros((72, 640), np.float32)
    for ki in range(5):
        for kj in range(5):
            for v in range(8):
                b_in = v + kj
                for cin in range(6):
                    w2t[b_in * 6 + cin,
                        ki * 128 + v * 16:ki * 128 + (v + 1) * 16] = w2[:, cin, ki, kj]
    b2t = np.tile(b2, 8).reshape(1, 1, 128)

    # fc1 consumes the un-decimated 2x2-max map (rows 2e; lanes v*16+c of each
    # 112-lane block); even-column selection and the torch NCHW flatten order
    # (idx = c*16 + e*4 + f) are baked into zeroed/permuted rows here.
    w3 = np.zeros((448, 120), np.float32)
    for e in range(4):
        for f in range(4):
            v = 2 * f
            for c in range(16):
                w3[e * 112 + v * 16 + c, :] = fw1[:, c * 16 + e * 4 + f]

    bf, f32 = jnp.bfloat16, jnp.float32
    return (jnp.asarray(w1r, bf), jnp.asarray(b1t, f32),
            jnp.asarray(w2t, bf), jnp.asarray(b2t, f32),
            jnp.asarray(w3, bf), jnp.asarray(fb1.reshape(1, 120), f32),
            jnp.asarray(fw2.T, bf), jnp.asarray(fb2.reshape(1, 84), f32),
            jnp.asarray(fw3.T, bf), jnp.asarray(fb3.reshape(1, NUM_CLASSES), f32))


# ------------------------------- Param init ---------------------------------

def init_params(key):
    def u(k, shape, fan_in):
        bound = 1.0 / (float(fan_in) ** 0.5)
        return jax.random.uniform(k, shape, jnp.float32, -bound, bound)

    ks = jax.random.split(key, 10)
    w1 = u(ks[0], (6, 1, 5, 5), 1 * 5 * 5)
    b1 = u(ks[1], (6,), 1 * 5 * 5)
    w2 = u(ks[2], (16, 6, 5, 5), 6 * 5 * 5)
    b2 = u(ks[3], (16,), 6 * 5 * 5)
    fw1 = u(ks[4], (120, 16 * 4 * 4), 16 * 4 * 4)
    fb1 = u(ks[5], (120,), 16 * 4 * 4)
    fw2 = u(ks[6], (84, 120), 120)
    fb2 = u(ks[7], (84,), 120)
    fw3 = u(ks[8], (NUM_CLASSES, 84), 84)
    fb3 = u(ks[9], (NUM_CLASSES,), 84)
    return ((w1, b1), (w2, b2), (fw1, fb1), (fw2, fb2), (fw3, fb3))


# ---------------------------- Pure-JAX reference ----------------------------

def ref_forward(x_nchw, params):
    (w1, b1), (w2, b2), (fw1, fb1), (fw2, fb2), (fw3, fb3) = params

    def conv(x, w, b):
        y = lax.conv_general_dilated(x, w, (1, 1), "VALID",
                                     dimension_numbers=("NCHW", "OIHW", "NCHW"))
        return jnp.maximum(y + b[None, :, None, None], 0.0)

    def pool(x):
        return lax.reduce_window(x, -jnp.inf, lax.max,
                                 (1, 1, 2, 2), (1, 1, 2, 2), "VALID")

    y = pool(conv(x_nchw, w1, b1))
    y = pool(conv(y, w2, b2))
    y = y.reshape(y.shape[0], -1)
    y = jnp.maximum(y @ fw1.T + fb1, 0.0)
    y = jnp.maximum(y @ fw2.T + fb2, 0.0)
    return y @ fw3.T + fb3


if __name__ == "__main__":
    key = jax.random.PRNGKey(0)
    kx, kp = jax.random.split(key)
    x = jax.random.normal(kx, (2, 1, 28, 28), jnp.float32)   # NCHW, like PyTorch
    params = init_params(kp)
    prepared = prepare_params(params)                        # one-time, hoisted

    fwd = jax.jit(lenet_forward)
    out = jax.block_until_ready(fwd(x, prepared))

    ref = ref_forward(x, params)
    assert out.shape == (2, NUM_CLASSES), out.shape
    assert bool(jnp.all(jnp.isfinite(out)))
    assert bool(jnp.allclose(out, ref, rtol=3e-2, atol=3e-2)), (out, ref)
    print("KERNEL_OK")
</pallas_src>

<mosaic_0001>
module attributes {stable_mosaic.version = 11 : i64} {
  func.func @_lenet_kernel(%arg0: i32, %arg1: memref<8x2x24x32xf32, #tpu.memory_space<vmem>>, %arg2: memref<160x144xbf16, #tpu.memory_space<vmem>>, %arg3: memref<1x1x72xf32, #tpu.memory_space<vmem>>, %arg4: memref<72x640xbf16, #tpu.memory_space<vmem>>, %arg5: memref<1x1x128xf32, #tpu.memory_space<vmem>>, %arg6: memref<448x120xbf16, #tpu.memory_space<vmem>>, %arg7: memref<1x120xf32, #tpu.memory_space<vmem>>, %arg8: memref<120x84xbf16, #tpu.memory_space<vmem>>, %arg9: memref<1x84xf32, #tpu.memory_space<vmem>>, %arg10: memref<84x3xbf16, #tpu.memory_space<vmem>>, %arg11: memref<1x3xf32, #tpu.memory_space<vmem>>, %arg12: memref<8x3xf32, #tpu.memory_space<vmem>>) attributes {dimension_semantics = [#tpu.dimension_semantics<parallel>], iteration_bounds = array<i64: 1>, scalar_prefetch = 0 : i64, scratch_operands = 0 : i64, tpu.core_type = #tpu.core_type<tc>, window_params = [{transform_indices = @transform_0, window_bounds = array<i64: 8, 2, 24, 32>}, {pipeline_mode = #tpu.pipeline_mode<synchronous>, transform_indices = @transform_1, window_bounds = array<i64: 160, 144>}, {pipeline_mode = #tpu.pipeline_mode<synchronous>, transform_indices = @transform_2, window_bounds = array<i64: 1, 1, 72>}, {pipeline_mode = #tpu.pipeline_mode<synchronous>, transform_indices = @transform_3, window_bounds = array<i64: 72, 640>}, {pipeline_mode = #tpu.pipeline_mode<synchronous>, transform_indices = @transform_4, window_bounds = array<i64: 1, 1, 128>}, {pipeline_mode = #tpu.pipeline_mode<synchronous>, transform_indices = @transform_5, window_bounds = array<i64: 448, 120>}, {pipeline_mode = #tpu.pipeline_mode<synchronous>, transform_indices = @transform_6, window_bounds = array<i64: 1, 120>}, {pipeline_mode = #tpu.pipeline_mode<synchronous>, transform_indices = @transform_7, window_bounds = array<i64: 120, 84>}, {pipeline_mode = #tpu.pipeline_mode<synchronous>, transform_indices = @transform_8, window_bounds = array<i64: 1, 84>}, {pipeline_mode = #tpu.pipeline_mode<synchronous>, transform_indices = @transform_9, window_bounds = array<i64: 84, 3>}, {pipeline_mode = #tpu.pipeline_mode<synchronous>, transform_indices = @transform_10, window_bounds = array<i64: 1, 3>}, {transform_indices = @transform_11, window_bounds = array<i64: 8, 3>}]} {
    %c0 = arith.constant 0 : index
    %c0_0 = arith.constant 0 : index
    %c0_1 = arith.constant 0 : index
    %c0_2 = arith.constant 0 : index
    %0 = vector.load %arg1[%c0, %c0_0, %c0_1, %c0_2] : memref<8x2x24x32xf32, #tpu.memory_space<vmem>>, vector<8x2x24x32xf32>
    %1 = vector.extract_strided_slice %0 {offsets = [0, 0, 0, 0], sizes = [8, 1, 24, 32], strides = [1, 1, 1, 1]} : vector<8x2x24x32xf32> to vector<8x1x24x32xf32>
    %2 = vector.shape_cast %1 : vector<8x1x24x32xf32> to vector<8x24x32xf32>
    %3 = vector.extract_strided_slice %0 {offsets = [0, 1, 0, 0], sizes = [8, 1, 24, 32], strides = [1, 1, 1, 1]} : vector<8x2x24x32xf32> to vector<8x1x24x32xf32>
    %4 = vector.shape_cast %3 : vector<8x1x24x32xf32> to vector<8x24x32xf32>
    %5 = vector.extract_strided_slice %2 {offsets = [0, 0, 0], sizes = [8, 16, 32], strides = [1, 1, 1]} : vector<8x24x32xf32> to vector<8x16x32xf32>
    %6 = vector.extract_strided_slice %4 {offsets = [0, 0, 0], sizes = [8, 16, 32], strides = [1, 1, 1]} : vector<8x24x32xf32> to vector<8x16x32xf32>
    %7 = vector.extract_strided_slice %2 {offsets = [0, 1, 0], sizes = [8, 16, 32], strides = [1, 1, 1]} : vector<8x24x32xf32> to vector<8x16x32xf32>
    %8 = vector.extract_strided_slice %4 {offsets = [0, 1, 0], sizes = [8, 16, 32], strides = [1, 1, 1]} : vector<8x24x32xf32> to vector<8x16x32xf32>
    %9 = vector.extract_strided_slice %2 {offsets = [0, 2, 0], sizes = [8, 16, 32], strides = [1, 1, 1]} : vector<8x24x32xf32> to vector<8x16x32xf32>
    %10 = tpu.concatenate %5, %6, %7, %8, %9 in 2 : vector<8x16x32xf32>, vector<8x16x32xf32>, vector<8x16x32xf32>, vector<8x16x32xf32>, vector<8x16x32xf32> -> vector<8x16x160xf32>
    %11 = vector.extract_strided_slice %4 {offsets = [0, 0, 0], sizes = [8, 16, 32], strides = [1, 1, 1]} : vector<8x24x32xf32> to vector<8x16x32xf32>
    %12 = vector.extract_strided_slice %2 {offsets = [0, 1, 0], sizes = [8, 16, 32], strides = [1, 1, 1]} : vector<8x24x32xf32> to vector<8x16x32xf32>
    %13 = vector.extract_strided_slice %4 {offsets = [0, 1, 0], sizes = [8, 16, 32], strides = [1, 1, 1]} : vector<8x24x32xf32> to vector<8x16x32xf32>
    %14 = vector.extract_strided_slice %2 {offsets = [0, 2, 0], sizes = [8, 16, 32], strides = [1, 1, 1]} : vector<8x24x32xf32> to vector<8x16x32xf32>
    %15 = vector.extract_strided_slice %4 {offsets = [0, 2, 0], sizes = [8, 16, 32], strides = [1, 1, 1]} : vector<8x24x32xf32> to vector<8x16x32xf32>
    %16 = tpu.concatenate %11, %12, %13, %14, %15 in 2 : vector<8x16x32xf32>, vector<8x16x32xf32>, vector<8x16x32xf32>, vector<8x16x32xf32>, vector<8x16x32xf32> -> vector<8x16x160xf32>
    %17 = tpu.concatenate %10, %16 in 0 : vector<8x16x160xf32>, vector<8x16x160xf32> -> vector<16x16x160xf32>
    %18 = vector.shape_cast %17 : vector<16x16x160xf32> to vector<256x160xf32>
    %19 = arith.truncf %18 : vector<256x160xf32> to vector<256x160xbf16>
    %c0_3 = arith.constant 0 : index
    %c0_4 = arith.constant 0 : index
    %20 = vector.load %arg2[%c0_3, %c0_4] : memref<160x144xbf16, #tpu.memory_space<vmem>>, vector<160x144xbf16>
    %cst = arith.constant dense<0.000000e+00> : vector<256x144xf32>
    %21 = tpu.matmul %19, %20, %cst {dimension_numbers = #tpu.dot_dimension_numbers<[1], [0], [0], [1], [0, 0, 1, 1], [], []>} : vector<256x160xbf16>, vector<160x144xbf16>, vector<256x144xf32> -> vector<256x144xf32>
    %22 = vector.shape_cast %21 : vector<256x144xf32> to vector<2x8x16x144xf32>
    %23 = vector.extract_strided_slice %22 {offsets = [0, 0, 0, 0], sizes = [1, 8, 16, 144], strides = [1, 1, 1, 1]} : vector<2x8x16x144xf32> to vector<1x8x16x144xf32>
    %24 = vector.shape_cast %23 : vector<1x8x16x144xf32> to vector<8x16x144xf32>
    %25 = vector.extract_strided_slice %22 {offsets = [1, 0, 0, 0], sizes = [1, 8, 16, 144], strides = [1, 1, 1, 1]} : vector<2x8x16x144xf32> to vector<1x8x16x144xf32>
    %26 = vector.shape_cast %25 : vector<1x8x16x144xf32> to vector<8x16x144xf32>
    %27 = arith.maximumf %24, %26 : vector<8x16x144xf32>
    %28 = vector.extract_strided_slice %27 {offsets = [0, 0, 0], sizes = [8, 16, 72], strides = [1, 1, 1]} : vector<8x16x144xf32> to vector<8x16x72xf32>
    %29 = vector.extract_strided_slice %27 {offsets = [0, 0, 72], sizes = [8, 16, 72], strides = [1, 1, 1]} : vector<8x16x144xf32> to vector<8x16x72xf32>
    %30 = arith.maximumf %28, %29 : vector<8x16x72xf32>
    %c0_5 = arith.constant 0 : index
    %c0_6 = arith.constant 0 : index
    %c0_7 = arith.constant 0 : index
    %31 = vector.load %arg3[%c0_5, %c0_6, %c0_7] : memref<1x1x72xf32, #tpu.memory_space<vmem>>, vector<1x1x72xf32>
    %32 = vector.broadcast %31 : vector<1x1x72xf32> to vector<8x16x72xf32>
    %33 = arith.addf %30, %32 : vector<8x16x72xf32>
    %cst_8 = arith.constant 0.000000e+00 : f32
    %34 = vector.broadcast %cst_8 : f32 to vector<8x16x72xf32>
    %35 = arith.maximumf %33, %34 : vector<8x16x72xf32>
    %36 = arith.truncf %35 : vector<8x16x72xf32> to vector<8x16x72xbf16>
    %37 = vector.shape_cast %36 : vector<8x16x72xbf16> to vector<128x72xbf16>
    %c0_9 = arith.constant 0 : index
    %c0_10 = arith.constant 0 : index
    %38 = vector.load %arg4[%c0_9, %c0_10] : memref<72x640xbf16, #tpu.memory_space<vmem>>, vector<72x640xbf16>
    %cst_11 = arith.constant dense<0.000000e+00> : vector<128x640xf32>
    %39 = tpu.matmul %37, %38, %cst_11 {dimension_numbers = #tpu.dot_dimension_numbers<[1], [0], [0], [1], [0, 0, 1, 1], [], []>} : vector<128x72xbf16>, vector<72x640xbf16>, vector<128x640xf32> -> vector<128x640xf32>
    %40 = vector.shape_cast %39 : vector<128x640xf32> to vector<8x16x640xf32>
    %41 = vector.extract_strided_slice %40 {offsets = [0, 0, 0], sizes = [8, 8, 128], strides = [1, 1, 1]} : vector<8x16x640xf32> to vector<8x8x128xf32>
    %42 = vector.extract_strided_slice %40 {offsets = [0, 1, 128], sizes = [8, 8, 128], strides = [1, 1, 1]} : vector<8x16x640xf32> to vector<8x8x128xf32>
    %43 = arith.addf %41, %42 : vector<8x8x128xf32>
    %44 = vector.extract_strided_slice %40 {offsets = [0, 2, 256], sizes = [8, 8, 128], strides = [1, 1, 1]} : vector<8x16x640xf32> to vector<8x8x128xf32>
    %45 = arith.addf %43, %44 : vector<8x8x128xf32>
    %46 = vector.extract_strided_slice %40 {offsets = [0, 3, 384], sizes = [8, 8, 128], strides = [1, 1, 1]} : vector<8x16x640xf32> to vector<8x8x128xf32>
    %47 = arith.addf %45, %46 : vector<8x8x128xf32>
    %48 = vector.extract_strided_slice %40 {offsets = [0, 4, 512], sizes = [8, 8, 128], strides = [1, 1, 1]} : vector<8x16x640xf32> to vector<8x8x128xf32>
    %49 = arith.addf %47, %48 : vector<8x8x128xf32>
    %c0_12 = arith.constant 0 : index
    %c0_13 = arith.constant 0 : index
    %c0_14 = arith.constant 0 : index
    %50 = vector.load %arg5[%c0_12, %c0_13, %c0_14] : memref<1x1x128xf32, #tpu.memory_space<vmem>>, vector<1x1x128xf32>
    %51 = vector.broadcast %50 : vector<1x1x128xf32> to vector<8x8x128xf32>
    %52 = arith.addf %49, %51 : vector<8x8x128xf32>
    %cst_15 = arith.constant 0.000000e+00 : f32
    %53 = vector.broadcast %cst_15 : f32 to vector<8x8x128xf32>
    %54 = arith.maximumf %52, %53 : vector<8x8x128xf32>
    %55 = vector.extract_strided_slice %54 {offsets = [0, 0, 0], sizes = [8, 7, 128], strides = [1, 1, 1]} : vector<8x8x128xf32> to vector<8x7x128xf32>
    %56 = vector.extract_strided_slice %54 {offsets = [0, 1, 0], sizes = [8, 7, 128], strides = [1, 1, 1]} : vector<8x8x128xf32> to vector<8x7x128xf32>
    %57 = arith.maximumf %55, %56 : vector<8x7x128xf32>
    %58 = vector.extract_strided_slice %57 {offsets = [0, 0, 0], sizes = [8, 7, 112], strides = [1, 1, 1]} : vector<8x7x128xf32> to vector<8x7x112xf32>
    %59 = vector.extract_strided_slice %57 {offsets = [0, 0, 16], sizes = [8, 7, 112], strides = [1, 1, 1]} : vector<8x7x128xf32> to vector<8x7x112xf32>
    %60 = arith.maximumf %58, %59 : vector<8x7x112xf32>
    %61 = vector.extract_strided_slice %60 {offsets = [0, 0, 0], sizes = [8, 1, 112], strides = [1, 1, 1]} : vector<8x7x112xf32> to vector<8x1x112xf32>
    %62 = vector.shape_cast %61 : vector<8x1x112xf32> to vector<8x112xf32>
    %63 = vector.extract_strided_slice %60 {offsets = [0, 2, 0], sizes = [8, 1, 112], strides = [1, 1, 1]} : vector<8x7x112xf32> to vector<8x1x112xf32>
    %64 = vector.shape_cast %63 : vector<8x1x112xf32> to vector<8x112xf32>
    %65 = vector.extract_strided_slice %60 {offsets = [0, 4, 0], sizes = [8, 1, 112], strides = [1, 1, 1]} : vector<8x7x112xf32> to vector<8x1x112xf32>
    %66 = vector.shape_cast %65 : vector<8x1x112xf32> to vector<8x112xf32>
    %67 = vector.extract_strided_slice %60 {offsets = [0, 6, 0], sizes = [8, 1, 112], strides = [1, 1, 1]} : vector<8x7x112xf32> to vector<8x1x112xf32>
    %68 = vector.shape_cast %67 : vector<8x1x112xf32> to vector<8x112xf32>
    %69 = tpu.concatenate %62, %64, %66, %68 in 1 : vector<8x112xf32>, vector<8x112xf32>, vector<8x112xf32>, vector<8x112xf32> -> vector<8x448xf32>
    %70 = arith.truncf %69 : vector<8x448xf32> to vector<8x448xbf16>
    %c0_16 = arith.constant 0 : index
    %c0_17 = arith.constant 0 : index
    %71 = vector.load %arg6[%c0_16, %c0_17] : memref<448x120xbf16, #tpu.memory_space<vmem>>, vector<448x120xbf16>
    %cst_18 = arith.constant dense<0.000000e+00> : vector<8x120xf32>
    %72 = tpu.matmul %70, %71, %cst_18 {dimension_numbers = #tpu.dot_dimension_numbers<[1], [0], [0], [1], [0, 0, 1, 1], [], []>} : vector<8x448xbf16>, vector<448x120xbf16>, vector<8x120xf32> -> vector<8x120xf32>
    %c0_19 = arith.constant 0 : index
    %c0_20 = arith.constant 0 : index
    %73 = vector.load %arg7[%c0_19, %c0_20] : memref<1x120xf32, #tpu.memory_space<vmem>>, vector<1x120xf32>
    %74 = vector.broadcast %73 : vector<1x120xf32> to vector<8x120xf32>
    %75 = arith.addf %72, %74 : vector<8x120xf32>
    %cst_21 = arith.constant 0.000000e+00 : f32
    %76 = vector.broadcast %cst_21 : f32 to vector<8x120xf32>
    %77 = arith.maximumf %75, %76 : vector<8x120xf32>
    %78 = arith.truncf %77 : vector<8x120xf32> to vector<8x120xbf16>
    %c0_22 = arith.constant 0 : index
    %c0_23 = arith.constant 0 : index
    %79 = vector.load %arg8[%c0_22, %c0_23] : memref<120x84xbf16, #tpu.memory_space<vmem>>, vector<120x84xbf16>
    %cst_24 = arith.constant dense<0.000000e+00> : vector<8x84xf32>
    %80 = tpu.matmul %78, %79, %cst_24 {dimension_numbers = #tpu.dot_dimension_numbers<[1], [0], [0], [1], [0, 0, 1, 1], [], []>} : vector<8x120xbf16>, vector<120x84xbf16>, vector<8x84xf32> -> vector<8x84xf32>
    %c0_25 = arith.constant 0 : index
    %c0_26 = arith.constant 0 : index
    %81 = vector.load %arg9[%c0_25, %c0_26] : memref<1x84xf32, #tpu.memory_space<vmem>>, vector<1x84xf32>
    %82 = vector.broadcast %81 : vector<1x84xf32> to vector<8x84xf32>
    %83 = arith.addf %80, %82 : vector<8x84xf32>
    %cst_27 = arith.constant 0.000000e+00 : f32
    %84 = vector.broadcast %cst_27 : f32 to vector<8x84xf32>
    %85 = arith.maximumf %83, %84 : vector<8x84xf32>
    %86 = arith.truncf %85 : vector<8x84xf32> to vector<8x84xbf16>
    %c0_28 = arith.constant 0 : index
    %c0_29 = arith.constant 0 : index
    %87 = vector.load %arg10[%c0_28, %c0_29] : memref<84x3xbf16, #tpu.memory_space<vmem>>, vector<84x3xbf16>
    %cst_30 = arith.constant dense<0.000000e+00> : vector<8x3xf32>
    %88 = tpu.matmul %86, %87, %cst_30 {dimension_numbers = #tpu.dot_dimension_numbers<[1], [0], [0], [1], [0, 0, 1, 1], [], []>} : vector<8x84xbf16>, vector<84x3xbf16>, vector<8x3xf32> -> vector<8x3xf32>
    %c0_31 = arith.constant 0 : index
    %c0_32 = arith.constant 0 : index
    %89 = vector.load %arg11[%c0_31, %c0_32] : memref<1x3xf32, #tpu.memory_space<vmem>>, vector<1x3xf32>
    %90 = vector.broadcast %89 : vector<1x3xf32> to vector<8x3xf32>
    %91 = arith.addf %88, %90 : vector<8x3xf32>
    %c0_33 = arith.constant 0 : index
    %c0_34 = arith.constant 0 : index
    %92 = vector.load %arg12[%c0_33, %c0_34] : memref<8x3xf32, #tpu.memory_space<vmem>>, vector<8x3xf32>
    tpu.vector_store %arg12[%c0_33, %c0_34], %91 {strides = array<i32>} : memref<8x3xf32, #tpu.memory_space<vmem>>, vector<8x3xf32>,
    return
  }
  func.func @transform_0(%arg0: i32) -> (i32, i32, i32, i32) {
    %c0_i32 = arith.constant 0 : i32
    %c0_i32_0 = arith.constant 0 : i32
    %c0_i32_1 = arith.constant 0 : i32
    %c0_i32_2 = arith.constant 0 : i32
    return %arg0, %c0_i32, %c0_i32_0, %c0_i32_1 : i32, i32, i32, i32
  }
  func.func @transform_1(%arg0: i32) -> (i32, i32) {
    %c0_i32 = arith.constant 0 : i32
    %c0_i32_0 = arith.constant 0 : i32
    %c0_i32_1 = arith.constant 0 : i32
    return %c0_i32, %c0_i32_0 : i32, i32
  }
  func.func @transform_2(%arg0: i32) -> (i32, i32, i32) {
    %c0_i32 = arith.constant 0 : i32
    %c0_i32_0 = arith.constant 0 : i32
    %c0_i32_1 = arith.constant 0 : i32
    %c0_i32_2 = arith.constant 0 : i32
    return %c0_i32, %c0_i32_0, %c0_i32_1 : i32, i32, i32
  }
  func.func @transform_3(%arg0: i32) -> (i32, i32) {
    %c0_i32 = arith.constant 0 : i32
    %c0_i32_0 = arith.constant 0 : i32
    %c0_i32_1 = arith.constant 0 : i32
    return %c0_i32, %c0_i32_0 : i32, i32
  }
  func.func @transform_4(%arg0: i32) -> (i32, i32, i32) {
    %c0_i32 = arith.constant 0 : i32
    %c0_i32_0 = arith.constant 0 : i32
    %c0_i32_1 = arith.constant 0 : i32
    %c0_i32_2 = arith.constant 0 : i32
    return %c0_i32, %c0_i32_0, %c0_i32_1 : i32, i32, i32
  }
  func.func @transform_5(%arg0: i32) -> (i32, i32) {
    %c0_i32 = arith.constant 0 : i32
    %c0_i32_0 = arith.constant 0 : i32
    %c0_i32_1 = arith.constant 0 : i32
    return %c0_i32, %c0_i32_0 : i32, i32
  }
  func.func @transform_6(%arg0: i32) -> (i32, i32) {
    %c0_i32 = arith.constant 0 : i32
    %c0_i32_0 = arith.constant 0 : i32
    %c0_i32_1 = arith.constant 0 : i32
    return %c0_i32, %c0_i32_0 : i32, i32
  }
  func.func @transform_7(%arg0: i32) -> (i32, i32) {
    %c0_i32 = arith.constant 0 : i32
    %c0_i32_0 = arith.constant 0 : i32
    %c0_i32_1 = arith.constant 0 : i32
    return %c0_i32, %c0_i32_0 : i32, i32
  }
  func.func @transform_8(%arg0: i32) -> (i32, i32) {
    %c0_i32 = arith.constant 0 : i32
    %c0_i32_0 = arith.constant 0 : i32
    %c0_i32_1 = arith.constant 0 : i32
    return %c0_i32, %c0_i32_0 : i32, i32
  }
  func.func @transform_9(%arg0: i32) -> (i32, i32) {
    %c0_i32 = arith.constant 0 : i32
    %c0_i32_0 = arith.constant 0 : i32
    %c0_i32_1 = arith.constant 0 : i32
    return %c0_i32, %c0_i32_0 : i32, i32
  }
  func.func @transform_10(%arg0: i32) -> (i32, i32) {
    %c0_i32 = arith.constant 0 : i32
    %c0_i32_0 = arith.constant 0 : i32
    %c0_i32_1 = arith.constant 0 : i32
    return %c0_i32, %c0_i32_0 : i32, i32
  }
  func.func @transform_11(%arg0: i32) -> (i32, i32) {
    %c0_i32 = arith.constant 0 : i32
    %c0_i32_0 = arith.constant 0 : i32
    return %arg0, %c0_i32 : i32, i32
  }
}

</mosaic_0001>

<llo_original>
// kernel: lenet_forward.1
$region0: #{lenet_forward.1}
  #allocation0 [shape = 'u32[]', space=smem, size = 0x4, offset = 0x4, fixed_abs, tag = 'smem constant byte address 0x4 - core index']
  #allocation1 [shape = 'u32[144,128]{1,0:T(1,128)}', space=vmem, size = 0x12000, scoped, tag = 'internal scratch']
  %s0 = inlined_call_operand.vmem [shape: f32[8,2,24,32], index: 0, kind: input, shape index: {}]
  %s1 = inlined_call_operand.vmem [shape: bf16[160,144], index: 1, kind: input, shape index: {}]
  %s2 = inlined_call_operand.vmem [shape: f32[1,1,72], index: 2, kind: input, shape index: {}]
  %s3 = inlined_call_operand.vmem [shape: bf16[72,640], index: 3, kind: input, shape index: {}]
  %s4 = inlined_call_operand.vmem [shape: f32[1,1,128], index: 4, kind: input, shape index: {}]
  %s5 = inlined_call_operand.vmem [shape: bf16[448,120], index: 5, kind: input, shape index: {}]
  %s6 = inlined_call_operand.vmem [shape: f32[1,120], index: 6, kind: input, shape index: {}]
  %s7 = inlined_call_operand.vmem [shape: bf16[120,84], index: 7, kind: input, shape index: {}]
  %s8 = inlined_call_operand.vmem [shape: f32[1,84], index: 8, kind: input, shape index: {}]
  %s9 = inlined_call_operand.vmem [shape: bf16[84,3], index: 9, kind: input, shape index: {}]
  %s10 = inlined_call_operand.vmem [shape: f32[1,3], index: 10, kind: input, shape index: {}]
  %s11 = inlined_call_operand.vmem [shape: f32[8,3], index: 11, kind: output, shape index: {}]
  %s12 = sld [smem:[#allocation0]]
  $region54: #{lenet_forward.1} parent=0
    _
  %s14 = ssub.s32 1, %s12
  %s15 = scalar_select 0, %s14, %s12
  // Predicated region
  $region2: #{lenet_forward.1} parent=0 // pred_check
    _
  $region3: #{lenet_forward.1} parent=0 // pred_check_branch
    %17 = sbr.rel (0) target = $region5
  $region4: #{lenet_forward.1} parent=0 // pred_region
    _
  $region5: #{lenet_forward.1} parent=0 // pred_fallthru
    _
  // Predicated region
  $region6: #{lenet_forward.1} parent=0 // pred_check
    _
  $region7: #{lenet_forward.1} parent=0 // pred_check_branch
    %19 = sbr.rel (0) target = $region9
  $region8: #{lenet_forward.1} parent=0 // pred_region
    _
  $region9: #{lenet_forward.1} parent=0 // pred_fallthru
    _
  // Predicated region
  $region10: #{lenet_forward.1} parent=0 // pred_check
    _
  $region11: #{lenet_forward.1} parent=0 // pred_check_branch
    %21 = sbr.rel (0) target = $region13
  $region12: #{lenet_forward.1} parent=0 // pred_region
    _
  $region13: #{lenet_forward.1} parent=0 // pred_fallthru
    _
  // Predicated region
  $region14: #{lenet_forward.1} parent=0 // pred_check
    _
  $region15: #{lenet_forward.1} parent=0 // pred_check_branch
    %23 = sbr.rel (0) target = $region17
  $region16: #{lenet_forward.1} parent=0 // pred_region
    _
  $region17: #{lenet_forward.1} parent=0 // pred_fallthru
    _
  // Predicated region
  $region18: #{lenet_forward.1} parent=0 // pred_check
    _
  $region19: #{lenet_forward.1} parent=0 // pred_check_branch
    %25 = sbr.rel (0) target = $region21
  $region20: #{lenet_forward.1} parent=0 // pred_region
    _
  $region21: #{lenet_forward.1} parent=0 // pred_fallthru
    _
  // Predicated region
  $region22: #{lenet_forward.1} parent=0 // pred_check
    _
  $region23: #{lenet_forward.1} parent=0 // pred_check_branch
    %27 = sbr.rel (0) target = $region25
  $region24: #{lenet_forward.1} parent=0 // pred_region
    _
  $region25: #{lenet_forward.1} parent=0 // pred_fallthru
    _
  // Predicated region
  $region26: #{lenet_forward.1} parent=0 // pred_check
    _
  $region27: #{lenet_forward.1} parent=0 // pred_check_branch
    %29 = sbr.rel (0) target = $region29
  $region28: #{lenet_forward.1} parent=0 // pred_region
    _
  $region29: #{lenet_forward.1} parent=0 // pred_fallthru
    _
  // Predicated region
  $region30: #{lenet_forward.1} parent=0 // pred_check
    _
  $region31: #{lenet_forward.1} parent=0 // pred_check_branch
    %31 = sbr.rel (0) target = $region33
  $region32: #{lenet_forward.1} parent=0 // pred_region
    _
  $region33: #{lenet_forward.1} parent=0 // pred_fallthru
    _
  // Predicated region
  $region34: #{lenet_forward.1} parent=0 // pred_check
    _
  $region35: #{lenet_forward.1} parent=0 // pred_check_branch
    %33 = sbr.rel (0) target = $region37
  $region36: #{lenet_forward.1} parent=0 // pred_region
    _
  $region37: #{lenet_forward.1} parent=0 // pred_fallthru
    _
  // Predicated region
  $region38: #{lenet_forward.1} parent=0 // pred_check
    _
  $region39: #{lenet_forward.1} parent=0 // pred_check_branch
    %35 = sbr.rel (0) target = $region41
  $region40: #{lenet_forward.1} parent=0 // pred_region
    _
  $region41: #{lenet_forward.1} parent=0 // pred_fallthru
    _
  // Predicated region
  $region42: #{lenet_forward.1} parent=0 // pred_check
    _
  $region43: #{lenet_forward.1} parent=0 // pred_check_branch
    %37 = sbr.rel (0) target = $region45
  $region44: #{lenet_forward.1} parent=0 // pred_region
    _
  $region45: #{lenet_forward.1} parent=0 // pred_fallthru
    _
  %v39 = vld [vmem:[%s0] sm:$0xff]
  %v40 = vld [vmem:[%s0 + $0x8] sm:$0xff]
  %v41 = vld [vmem:[%s0 + $0x10] sm:$0xff]
  %v42 = vld [vmem:[%s0 + $0x18] sm:$0xff]
  %v43 = vld [vmem:[%s0 + $0x20] sm:$0xff]
  %v44 = vld [vmem:[%s0 + $0x28] sm:$0xff]
  %v45 = vld [vmem:[%s0 + $0x30] sm:$0xff]
  %v46 = vld [vmem:[%s0 + $0x38] sm:$0xff]
  %v47 = vld [vmem:[%s0 + $0x40] sm:$0xff]
  %v48 = vld [vmem:[%s0 + $0x48] sm:$0xff]
  %v49 = vld [vmem:[%s0 + $0x50] sm:$0xff]
  %v50 = vld [vmem:[%s0 + $0x58] sm:$0xff]
  %v51 = vld [vmem:[%s0 + $0x60] sm:$0xff]
  %v52 = vld [vmem:[%s0 + $0x68] sm:$0xff]
  %v53 = vld [vmem:[%s0 + $0x70] sm:$0xff]
  %v54 = vld [vmem:[%s0 + $0x78] sm:$0xff]
  %v55 = vld [vmem:[%s0 + $0x80] sm:$0xff]
  %v56 = vld [vmem:[%s0 + $0x88] sm:$0xff]
  %v57 = vld [vmem:[%s0 + $0x90] sm:$0xff]
  %v58 = vld [vmem:[%s0 + $0x98] sm:$0xff]
  %v59 = vld [vmem:[%s0 + $0xa0] sm:$0xff]
  %v60 = vld [vmem:[%s0 + $0xa8] sm:$0xff]
  %v61 = vld [vmem:[%s0 + $0xb0] sm:$0xff]
  %v62 = vld [vmem:[%s0 + $0xb8] sm:$0xff]
  %v63 = vld [vmem:[%s0 + $0xc0] sm:$0xff]
  %v64 = vld [vmem:[%s0 + $0xc8] sm:$0xff]
  %v65 = vld [vmem:[%s0 + $0xd0] sm:$0xff]
  %v66 = vld [vmem:[%s0 + $0xd8] sm:$0xff]
  %v67 = vld [vmem:[%s0 + $0xe0] sm:$0xff]
  %v68 = vld [vmem:[%s0 + $0xe8] sm:$0xff]
  %v69 = vld [vmem:[%s0 + $0xf0] sm:$0xff]
  %v70 = vld [vmem:[%s0 + $0xf8] sm:$0xff]
  %v71 = vld [vmem:[%s0 + $0x100] sm:$0xff]
  %v72 = vld [vmem:[%s0 + $0x108] sm:$0xff]
  %v73 = vld [vmem:[%s0 + $0x110] sm:$0xff]
  %v74 = vld [vmem:[%s0 + $0x118] sm:$0xff]
  %v75 = vld [vmem:[%s0 + $0x120] sm:$0xff]
  %v76 = vld [vmem:[%s0 + $0x128] sm:$0xff]
  %v77 = vld [vmem:[%s0 + $0x130] sm:$0xff]
  %v78 = vld [vmem:[%s0 + $0x138] sm:$0xff]
  %v79 = vld [vmem:[%s0 + $0x140] sm:$0xff]
  %v80 = vld [vmem:[%s0 + $0x148] sm:$0xff]
  %v81 = vld [vmem:[%s0 + $0x150] sm:$0xff]
  %v82 = vld [vmem:[%s0 + $0x158] sm:$0xff]
  %v83 = vld [vmem:[%s0 + $0x160] sm:$0xff]
  %v84 = vld [vmem:[%s0 + $0x168] sm:$0xff]
  %v85 = vld [vmem:[%s0 + $0x170] sm:$0xff]
  %v86 = vld [vmem:[%s0 + $0x178] sm:$0xff]
  %103 = vrot.lane.b32.xlu0 %v42, 32
  %v104 = vpop.permute.xlu0 %103
  %105 = vrot.lane.b32.xlu0 %v43, 32
  %v106 = vpop.permute.xlu0 %105
  %107 = vrot.lane.b32.xlu0 %v48, 32
  %v108 = vpop.permute.xlu0 %107
  %109 = vrot.lane.b32.xlu0 %v49, 32
  %v110 = vpop.permute.xlu0 %109
  %111 = vrot.lane.b32.xlu0 %v54, 32
  %v112 = vpop.permute.xlu0 %111
  %113 = vrot.lane.b32.xlu0 %v55, 32
  %v114 = vpop.permute.xlu0 %113
  %115 = vrot.lane.b32.xlu0 %v60, 32
  %v116 = vpop.permute.xlu0 %115
  %117 = vrot.lane.b32.xlu0 %v61, 32
  %v118 = vpop.permute.xlu0 %117
  %119 = vrot.lane.b32.xlu0 %v66, 32
  %v120 = vpop.permute.xlu0 %119
  %121 = vrot.lane.b32.xlu0 %v67, 32
  %v122 = vpop.permute.xlu0 %121
  %123 = vrot.lane.b32.xlu0 %v72, 32
  %v124 = vpop.permute.xlu0 %123
  %125 = vrot.lane.b32.xlu0 %v73, 32
  %v126 = vpop.permute.xlu0 %125
  %127 = vrot.lane.b32.xlu0 %v78, 32
  %v128 = vpop.permute.xlu0 %127
  %129 = vrot.lane.b32.xlu0 %v79, 32
  %v130 = vpop.permute.xlu0 %129
  %131 = vrot.lane.b32.xlu0 %v84, 32
  %v132 = vpop.permute.xlu0 %131
  %133 = vrot.lane.b32.xlu0 %v85, 32
  %v134 = vpop.permute.xlu0 %133
  %vm175 = vcmask 1046528
  %v176 = vrot.slane %v39, 1
  %v177 = vrot.slane %v40, 1
  %v178 = vsel %vm175, %v176, %v177
  %v179 = vrot.slane %v41, 1
  %v180 = vsel %vm175, %v177, %v179
  %v181 = vrot.slane %v45, 1
  %v182 = vrot.slane %v46, 1
  %v183 = vsel %vm175, %v181, %v182
  %v184 = vrot.slane %v47, 1
  %v185 = vsel %vm175, %v182, %v184
  %v186 = vrot.slane %v51, 1
  %v187 = vrot.slane %v52, 1
  %v188 = vsel %vm175, %v186, %v187
  %v189 = vrot.slane %v53, 1
  %v190 = vsel %vm175, %v187, %v189
  %v191 = vrot.slane %v57, 1
  %v192 = vrot.slane %v58, 1
  %v193 = vsel %vm175, %v191, %v192
  %v194 = vrot.slane %v59, 1
  %v195 = vsel %vm175, %v192, %v194
  %v196 = vrot.slane %v63, 1
  %v197 = vrot.slane %v64, 1
  %v198 = vsel %vm175, %v196, %v197
  %v199 = vrot.slane %v65, 1
  %v200 = vsel %vm175, %v197, %v199
  %v201 = vrot.slane %v69, 1
  %v202 = vrot.slane %v70, 1
  %v203 = vsel %vm175, %v201, %v202
  %v204 = vrot.slane %v71, 1
  %v205 = vsel %vm175, %v202, %v204
  %v206 = vrot.slane %v75, 1
  %v207 = vrot.slane %v76, 1
  %v208 = vsel %vm175, %v206, %v207
  %v209 = vrot.slane %v77, 1
  %v210 = vsel %vm175, %v207, %v209
  %v211 = vrot.slane %v81, 1
  %v212 = vrot.slane %v82, 1
  %v213 = vsel %vm175, %v211, %v212
  %v214 = vrot.slane %v83, 1
  %v215 = vsel %vm175, %v212, %v214
  %216 = vrot.lane.b32.xlu0 %v178, 64
  %v217 = vpop.permute.xlu0 %216
  %218 = vrot.lane.b32.xlu0 %v180, 64
  %v219 = vpop.permute.xlu0 %218
  %220 = vrot.lane.b32.xlu0 %v183, 64
  %v221 = vpop.permute.xlu0 %220
  %222 = vrot.lane.b32.xlu0 %v185, 64
  %v223 = vpop.permute.xlu0 %222
  %224 = vrot.lane.b32.xlu0 %v188, 64
  %v225 = vpop.permute.xlu0 %224
  %226 = vrot.lane.b32.xlu0 %v190, 64
  %v227 = vpop.permute.xlu0 %226
  %228 = vrot.lane.b32.xlu0 %v193, 64
  %v229 = vpop.permute.xlu0 %228
  %230 = vrot.lane.b32.xlu0 %v195, 64
  %v231 = vpop.permute.xlu0 %230
  %232 = vrot.lane.b32.xlu0 %v198, 64
  %v233 = vpop.permute.xlu0 %232
  %234 = vrot.lane.b32.xlu0 %v200, 64
  %v235 = vpop.permute.xlu0 %234
  %236 = vrot.lane.b32.xlu0 %v203, 64
  %v237 = vpop.permute.xlu0 %236
  %238 = vrot.lane.b32.xlu0 %v205, 64
  %v239 = vpop.permute.xlu0 %238
  %240 = vrot.lane.b32.xlu0 %v208, 64
  %v241 = vpop.permute.xlu0 %240
  %242 = vrot.lane.b32.xlu0 %v210, 64
  %v243 = vpop.permute.xlu0 %242
  %244 = vrot.lane.b32.xlu0 %v213, 64
  %v245 = vpop.permute.xlu0 %244
  %246 = vrot.lane.b32.xlu0 %v215, 64
  %v247 = vpop.permute.xlu0 %246
  %v272 = vrot.slane %v42, 1
  %v273 = vrot.slane %v43, 1
  %v274 = vsel %vm175, %v272, %v273
  %v275 = vrot.slane %v44, 1
  %v276 = vsel %vm175, %v273, %v275
  %v277 = vrot.slane %v48, 1
  %v278 = vrot.slane %v49, 1
  %v279 = vsel %vm175, %v277, %v278
  %v280 = vrot.slane %v50, 1
  %v281 = vsel %vm175, %v278, %v280
  %v282 = vrot.slane %v54, 1
  %v283 = vrot.slane %v55, 1
  %v284 = vsel %vm175, %v282, %v283
  %v285 = vrot.slane %v56, 1
  %v286 = vsel %vm175, %v283, %v285
  %v287 = vrot.slane %v60, 1
  %v288 = vrot.slane %v61, 1
  %v289 = vsel %vm175, %v287, %v288
  %v290 = vrot.slane %v62, 1
  %v291 = vsel %vm175, %v288, %v290
  %v292 = vrot.slane %v66, 1
  %v293 = vrot.slane %v67, 1
  %v294 = vsel %vm175, %v292, %v293
  %v295 = vrot.slane %v68, 1
  %v296 = vsel %vm175, %v293, %v295
  %v297 = vrot.slane %v72, 1
  %v298 = vrot.slane %v73, 1
  %v299 = vsel %vm175, %v297, %v298
  %v300 = vrot.slane %v74, 1
  %v301 = vsel %vm175, %v298, %v300
  %v302 = vrot.slane %v78, 1
  %v303 = vrot.slane %v79, 1
  %v304 = vsel %vm175, %v302, %v303
  %v305 = vrot.slane %v80, 1
  %v306 = vsel %vm175, %v303, %v305
  %v307 = vrot.slane %v84, 1
  %v308 = vrot.slane %v85, 1
  %v309 = vsel %vm175, %v307, %v308
  %v310 = vrot.slane %v86, 1
  %v311 = vsel %vm175, %v308, %v310
  %312 = vrot.lane.b32.xlu0 %v274, 96
  %v313 = vpop.permute.xlu0 %312
  %314 = vrot.lane.b32.xlu0 %v276, 96
  %v315 = vpop.permute.xlu0 %314
  %316 = vrot.lane.b32.xlu0 %v279, 96
  %v317 = vpop.permute.xlu0 %316
  %318 = vrot.lane.b32.xlu0 %v281, 96
  %v319 = vpop.permute.xlu0 %318
  %320 = vrot.lane.b32.xlu0 %v284, 96
  %v321 = vpop.permute.xlu0 %320
  %322 = vrot.lane.b32.xlu0 %v286, 96
  %v323 = vpop.permute.xlu0 %322
  %324 = vrot.lane.b32.xlu0 %v289, 96
  %v325 = vpop.permute.xlu0 %324
  %326 = vrot.lane.b32.xlu0 %v291, 96
  %v327 = vpop.permute.xlu0 %326
  %328 = vrot.lane.b32.xlu0 %v294, 96
  %v329 = vpop.permute.xlu0 %328
  %330 = vrot.lane.b32.xlu0 %v296, 96
  %v331 = vpop.permute.xlu0 %330
  %332 = vrot.lane.b32.xlu0 %v299, 96
  %v333 = vpop.permute.xlu0 %332
  %334 = vrot.lane.b32.xlu0 %v301, 96
  %v335 = vpop.permute.xlu0 %334
  %336 = vrot.lane.b32.xlu0 %v304, 96
  %v337 = vpop.permute.xlu0 %336
  %338 = vrot.lane.b32.xlu0 %v306, 96
  %v339 = vpop.permute.xlu0 %338
  %340 = vrot.lane.b32.xlu0 %v309, 96
  %v341 = vpop.permute.xlu0 %340
  %342 = vrot.lane.b32.xlu0 %v311, 96
  %v343 = vpop.permute.xlu0 %342
  %vm360 = vcmask 1045504
  %v361 = vrot.slane %v39, 2
  %v362 = vrot.slane %v40, 2
  %v363 = vsel %vm360, %v361, %v362
  %v364 = vrot.slane %v41, 2
  %v365 = vsel %vm360, %v362, %v364
  %v366 = vrot.slane %v45, 2
  %v367 = vrot.slane %v46, 2
  %v368 = vsel %vm360, %v366, %v367
  %v369 = vrot.slane %v47, 2
  %v370 = vsel %vm360, %v367, %v369
  %v371 = vrot.slane %v51, 2
  %v372 = vrot.slane %v52, 2
  %v373 = vsel %vm360, %v371, %v372
  %v374 = vrot.slane %v53, 2
  %v375 = vsel %vm360, %v372, %v374
  %v376 = vrot.slane %v57, 2
  %v377 = vrot.slane %v58, 2
  %v378 = vsel %vm360, %v376, %v377
  %v379 = vrot.slane %v59, 2
  %v380 = vsel %vm360, %v377, %v379
  %v381 = vrot.slane %v63, 2
  %v382 = vrot.slane %v64, 2
  %v383 = vsel %vm360, %v381, %v382
  %v384 = vrot.slane %v65, 2
  %v385 = vsel %vm360, %v382, %v384
  %v386 = vrot.slane %v69, 2
  %v387 = vrot.slane %v70, 2
  %v388 = vsel %vm360, %v386, %v387
  %v389 = vrot.slane %v71, 2
  %v390 = vsel %vm360, %v387, %v389
  %v391 = vrot.slane %v75, 2
  %v392 = vrot.slane %v76, 2
  %v393 = vsel %vm360, %v391, %v392
  %v394 = vrot.slane %v77, 2
  %v395 = vsel %vm360, %v392, %v394
  %v396 = vrot.slane %v81, 2
  %v397 = vrot.slane %v82, 2
  %v398 = vsel %vm360, %v396, %v397
  %v399 = vrot.slane %v83, 2
  %v400 = vsel %vm360, %v397, %v399
  %vm417 = vcmask 261120
  %v418 = vsel %vm417, %v39, %v104
  %v419 = vsel %vm417, %v40, %v106
  %v420 = vsel %vm417, %v45, %v108
  %v421 = vsel %vm417, %v46, %v110
  %v422 = vsel %vm417, %v51, %v112
  %v423 = vsel %vm417, %v52, %v114
  %v424 = vsel %vm417, %v57, %v116
  %v425 = vsel %vm417, %v58, %v118
  %v426 = vsel %vm417, %v63, %v120
  %v427 = vsel %vm417, %v64, %v122
  %v428 = vsel %vm417, %v69, %v124
  %v429 = vsel %vm417, %v70, %v126
  %v430 = vsel %vm417, %v75, %v128
  %v431 = vsel %vm417, %v76, %v130
  %v432 = vsel %vm417, %v81, %v132
  %v433 = vsel %vm417, %v82, %v134
  %vm434 = vcmask 523264
  %v435 = vsel %vm434, %v418, %v217
  %v436 = vsel %vm434, %v419, %v219
  %v437 = vsel %vm434, %v420, %v221
  %v438 = vsel %vm434, %v421, %v223
  %v439 = vsel %vm434, %v422, %v225
  %v440 = vsel %vm434, %v423, %v227
  %v441 = vsel %vm434, %v424, %v229
  %v442 = vsel %vm434, %v425, %v231
  %v443 = vsel %vm434, %v426, %v233
  %v444 = vsel %vm434, %v427, %v235
  %v445 = vsel %vm434, %v428, %v237
  %v446 = vsel %vm434, %v429, %v239
  %v447 = vsel %vm434, %v430, %v241
  %v448 = vsel %vm434, %v431, %v243
  %v449 = vsel %vm434, %v432, %v245
  %v450 = vsel %vm434, %v433, %v247
  %vm451 = vcmask 785408
  %v452 = vsel %vm451, %v435, %v313
  %v453 = vsel %vm451, %v436, %v315
  %v454 = vsel %vm451, %v437, %v317
  %v455 = vsel %vm451, %v438, %v319
  %v456 = vsel %vm451, %v439, %v321
  %v457 = vsel %vm451, %v440, %v323
  %v458 = vsel %vm451, %v441, %v325
  %v459 = vsel %vm451, %v442, %v327
  %v460 = vsel %vm451, %v443, %v329
  %v461 = vsel %vm451, %v444, %v331
  %v462 = vsel %vm451, %v445, %v333
  %v463 = vsel %vm451, %v446, %v335
  %v464 = vsel %vm451, %v447, %v337
  %v465 = vsel %vm451, %v448, %v339
  %v466 = vsel %vm451, %v449, %v341
  %v467 = vsel %vm451, %v450, %v343
  %468 = vrot.lane.b32.xlu0 %v178, 32
  %v469 = vpop.permute.xlu0 %468
  %470 = vrot.lane.b32.xlu0 %v180, 32
  %v471 = vpop.permute.xlu0 %470
  %472 = vrot.lane.b32.xlu0 %v183, 32
  %v473 = vpop.permute.xlu0 %472
  %474 = vrot.lane.b32.xlu0 %v185, 32
  %v475 = vpop.permute.xlu0 %474
  %476 = vrot.lane.b32.xlu0 %v188, 32
  %v477 = vpop.permute.xlu0 %476
  %478 = vrot.lane.b32.xlu0 %v190, 32
  %v479 = vpop.permute.xlu0 %478
  %480 = vrot.lane.b32.xlu0 %v193, 32
  %v481 = vpop.permute.xlu0 %480
  %482 = vrot.lane.b32.xlu0 %v195, 32
  %v483 = vpop.permute.xlu0 %482
  %484 = vrot.lane.b32.xlu0 %v198, 32
  %v485 = vpop.permute.xlu0 %484
  %486 = vrot.lane.b32.xlu0 %v200, 32
  %v487 = vpop.permute.xlu0 %486
  %488 = vrot.lane.b32.xlu0 %v203, 32
  %v489 = vpop.permute.xlu0 %488
  %490 = vrot.lane.b32.xlu0 %v205, 32
  %v491 = vpop.permute.xlu0 %490
  %492 = vrot.lane.b32.xlu0 %v208, 32
  %v493 = vpop.permute.xlu0 %492
  %494 = vrot.lane.b32.xlu0 %v210, 32
  %v495 = vpop.permute.xlu0 %494
  %496 = vrot.lane.b32.xlu0 %v213, 32
  %v497 = vpop.permute.xlu0 %496
  %498 = vrot.lane.b32.xlu0 %v215, 32
  %v499 = vpop.permute.xlu0 %498
  %516 = vrot.lane.b32.xlu0 %v274, 64
  %v517 = vpop.permute.xlu0 %516
  %518 = vrot.lane.b32.xlu0 %v276, 64
  %v519 = vpop.permute.xlu0 %518
  %520 = vrot.lane.b32.xlu0 %v279, 64
  %v521 = vpop.permute.xlu0 %520
  %522 = vrot.lane.b32.xlu0 %v281, 64
  %v523 = vpop.permute.xlu0 %522
  %524 = vrot.lane.b32.xlu0 %v284, 64
  %v525 = vpop.permute.xlu0 %524
  %526 = vrot.lane.b32.xlu0 %v286, 64
  %v527 = vpop.permute.xlu0 %526
  %528 = vrot.lane.b32.xlu0 %v289, 64
  %v529 = vpop.permute.xlu0 %528
  %530 = vrot.lane.b32.xlu0 %v291, 64
  %v531 = vpop.permute.xlu0 %530
  %532 = vrot.lane.b32.xlu0 %v294, 64
  %v533 = vpop.permute.xlu0 %532
  %534 = vrot.lane.b32.xlu0 %v296, 64
  %v535 = vpop.permute.xlu0 %534
  %536 = vrot.lane.b32.xlu0 %v299, 64
  %v537 = vpop.permute.xlu0 %536
  %538 = vrot.lane.b32.xlu0 %v301, 64
  %v539 = vpop.permute.xlu0 %538
  %540 = vrot.lane.b32.xlu0 %v304, 64
  %v541 = vpop.permute.xlu0 %540
  %542 = vrot.lane.b32.xlu0 %v306, 64
  %v543 = vpop.permute.xlu0 %542
  %544 = vrot.lane.b32.xlu0 %v309, 64
  %v545 = vpop.permute.xlu0 %544
  %546 = vrot.lane.b32.xlu0 %v311, 64
  %v547 = vpop.permute.xlu0 %546
  %564 = vrot.lane.b32.xlu0 %v363, 96
  %v565 = vpop.permute.xlu0 %564
  %566 = vrot.lane.b32.xlu0 %v365, 96
  %v567 = vpop.permute.xlu0 %566
  %568 = vrot.lane.b32.xlu0 %v368, 96
  %v569 = vpop.permute.xlu0 %568
  %570 = vrot.lane.b32.xlu0 %v370, 96
  %v571 = vpop.permute.xlu0 %570
  %572 = vrot.lane.b32.xlu0 %v373, 96
  %v573 = vpop.permute.xlu0 %572
  %574 = vrot.lane.b32.xlu0 %v375, 96
  %v575 = vpop.permute.xlu0 %574
  %576 = vrot.lane.b32.xlu0 %v378, 96
  %v577 = vpop.permute.xlu0 %576
  %578 = vrot.lane.b32.xlu0 %v380, 96
  %v579 = vpop.permute.xlu0 %578
  %580 = vrot.lane.b32.xlu0 %v383, 96
  %v581 = vpop.permute.xlu0 %580
  %582 = vrot.lane.b32.xlu0 %v385, 96
  %v583 = vpop.permute.xlu0 %582
  %584 = vrot.lane.b32.xlu0 %v388, 96
  %v585 = vpop.permute.xlu0 %584
  %586 = vrot.lane.b32.xlu0 %v390, 96
  %v587 = vpop.permute.xlu0 %586
  %588 = vrot.lane.b32.xlu0 %v393, 96
  %v589 = vpop.permute.xlu0 %588
  %590 = vrot.lane.b32.xlu0 %v395, 96
  %v591 = vpop.permute.xlu0 %590
  %592 = vrot.lane.b32.xlu0 %v398, 96
  %v593 = vpop.permute.xlu0 %592
  %594 = vrot.lane.b32.xlu0 %v400, 96
  %v595 = vpop.permute.xlu0 %594
  %v612 = vrot.slane %v42, 2
  %v613 = vrot.slane %v43, 2
  %v614 = vsel %vm360, %v612, %v613
  %v615 = vrot.slane %v44, 2
  %v616 = vsel %vm360, %v613, %v615
  %v617 = vrot.slane %v48, 2
  %v618 = vrot.slane %v49, 2
  %v619 = vsel %vm360, %v617, %v618
  %v620 = vrot.slane %v50, 2
  %v621 = vsel %vm360, %v618, %v620
  %v622 = vrot.slane %v54, 2
  %v623 = vrot.slane %v55, 2
  %v624 = vsel %vm360, %v622, %v623
  %v625 = vrot.slane %v56, 2
  %v626 = vsel %vm360, %v623, %v625
  %v627 = vrot.slane %v60, 2
  %v628 = vrot.slane %v61, 2
  %v629 = vsel %vm360, %v627, %v628
  %v630 = vrot.slane %v62, 2
  %v631 = vsel %vm360, %v628, %v630
  %v632 = vrot.slane %v66, 2
  %v633 = vrot.slane %v67, 2
  %v634 = vsel %vm360, %v632, %v633
  %v635 = vrot.slane %v68, 2
  %v636 = vsel %vm360, %v633, %v635
  %v637 = vrot.slane %v72, 2
  %v638 = vrot.slane %v73, 2
  %v639 = vsel %vm360, %v637, %v638
  %v640 = vrot.slane %v74, 2
  %v641 = vsel %vm360, %v638, %v640
  %v642 = vrot.slane %v78, 2
  %v643 = vrot.slane %v79, 2
  %v644 = vsel %vm360, %v642, %v643
  %v645 = vrot.slane %v80, 2
  %v646 = vsel %vm360, %v643, %v645
  %v647 = vrot.slane %v84, 2
  %v648 = vrot.slane %v85, 2
  %v649 = vsel %vm360, %v647, %v648
  %v650 = vrot.slane %v86, 2
  %v651 = vsel %vm360, %v648, %v650
  %v668 = vsel %vm417, %v42, %v469
  %v669 = vsel %vm417, %v43, %v471
  %v670 = vsel %vm417, %v48, %v473
  %v671 = vsel %vm417, %v49, %v475
  %v672 = vsel %vm417, %v54, %v477
  %v673 = vsel %vm417, %v55, %v479
  %v674 = vsel %vm417, %v60, %v481
  %v675 = vsel %vm417, %v61, %v483
  %v676 = vsel %vm417, %v66, %v485
  %v677 = vsel %vm417, %v67, %v487
  %v678 = vsel %vm417, %v72, %v489
  %v679 = vsel %vm417, %v73, %v491
  %v680 = vsel %vm417, %v78, %v493
  %v681 = vsel %vm417, %v79, %v495
  %v682 = vsel %vm417, %v84, %v497
  %v683 = vsel %vm417, %v85, %v499
  %v684 = vsel %vm434, %v668, %v517
  %v685 = vsel %vm434, %v669, %v519
  %v686 = vsel %vm434, %v670, %v521
  %v687 = vsel %vm434, %v671, %v523
  %v688 = vsel %vm434, %v672, %v525
  %v689 = vsel %vm434, %v673, %v527
  %v690 = vsel %vm434, %v674, %v529
  %v691 = vsel %vm434, %v675, %v531
  %v692 = vsel %vm434, %v676, %v533
  %v693 = vsel %vm434, %v677, %v535
  %v694 = vsel %vm434, %v678, %v537
  %v695 = vsel %vm434, %v679, %v539
  %v696 = vsel %vm434, %v680, %v541
  %v697 = vsel %vm434, %v681, %v543
  %v698 = vsel %vm434, %v682, %v545
  %v699 = vsel %vm434, %v683, %v547
  %v700 = vsel %vm451, %v684, %v565
  %v701 = vsel %vm451, %v685, %v567
  %v702 = vsel %vm451, %v686, %v569
  %v703 = vsel %vm451, %v687, %v571
  %v704 = vsel %vm451, %v688, %v573
  %v705 = vsel %vm451, %v689, %v575
  %v706 = vsel %vm451, %v690, %v577
  %v707 = vsel %vm451, %v691, %v579
  %v708 = vsel %vm451, %v692, %v581
  %v709 = vsel %vm451, %v693, %v583
  %v710 = vsel %vm451, %v694, %v585
  %v711 = vsel %vm451, %v695, %v587
  %v712 = vsel %vm451, %v696, %v589
  %v713 = vsel %vm451, %v697, %v591
  %v714 = vsel %vm451, %v698, %v593
  %v715 = vsel %vm451, %v699, %v595
  %v716 = vpack.c.bf16 %v453, %v452
  %v717 = vpack.c.bf16 %v365, %v363
  %v718 = vpack.c.bf16 %v455, %v454
  %v719 = vpack.c.bf16 %v370, %v368
  %v720 = vpack.c.bf16 %v457, %v456
  %v721 = vpack.c.bf16 %v375, %v373
  %v722 = vpack.c.bf16 %v459, %v458
  %v723 = vpack.c.bf16 %v380, %v378
  %v724 = vpack.c.bf16 %v461, %v460
  %v725 = vpack.c.bf16 %v385, %v383
  %v726 = vpack.c.bf16 %v463, %v462
  %v727 = vpack.c.bf16 %v390, %v388
  %v728 = vpack.c.bf16 %v465, %v464
  %v729 = vpack.c.bf16 %v395, %v393
  %v730 = vpack.c.bf16 %v467, %v466
  %v731 = vpack.c.bf16 %v400, %v398
  %v732 = vpack.c.bf16 %v701, %v700
  %v733 = vpack.c.bf16 %v616, %v614
  %v734 = vpack.c.bf16 %v703, %v702
  %v735 = vpack.c.bf16 %v621, %v619
  %v736 = vpack.c.bf16 %v705, %v704
  %v737 = vpack.c.bf16 %v626, %v624
  %v738 = vpack.c.bf16 %v707, %v706
  %v739 = vpack.c.bf16 %v631, %v629
  %v740 = vpack.c.bf16 %v709, %v708
  %v741 = vpack.c.bf16 %v636, %v634
  %v742 = vpack.c.bf16 %v711, %v710
  %v743 = vpack.c.bf16 %v641, %v639
  %v744 = vpack.c.bf16 %v713, %v712
  %v745 = vpack.c.bf16 %v646, %v644
  %v746 = vpack.c.bf16 %v715, %v714
  %v747 = vpack.c.bf16 %v651, %v649
  %v748 = vld [vmem:[%s1] sm:$0xff]
  %v749 = vld [vmem:[%s1 + $0x8] sm:$0xff]
  %v750 = vld [vmem:[%s1 + $0x10] sm:$0xff]
  %v751 = vld [vmem:[%s1 + $0x18] sm:$0xff]
  %v752 = vld [vmem:[%s1 + $0x20] sm:$0xff]
  %v753 = vld [vmem:[%s1 + $0x28] sm:$0xff]
  %v754 = vld [vmem:[%s1 + $0x30] sm:$0xff]
  %v755 = vld [vmem:[%s1 + $0x38] sm:$0xff]
  %v756 = vld [vmem:[%s1 + $0x40] sm:$0xff]
  %v757 = vld [vmem:[%s1 + $0x48] sm:$0xff]
  %v758 = vld [vmem:[%s1 + $0x50] sm:$0xff]
  %v759 = vld [vmem:[%s1 + $0x58] sm:$0xff]
  %v760 = vld [vmem:[%s1 + $0x60] sm:$0xff]
  %v761 = vld [vmem:[%s1 + $0x68] sm:$0xff]
  %v762 = vld [vmem:[%s1 + $0x70] sm:$0xff]
  %v763 = vld [vmem:[%s1 + $0x78] sm:$0xff]
  %v764 = vld [vmem:[%s1 + $0x80] sm:$0xff]
  %v765 = vld [vmem:[%s1 + $0x88] sm:$0xff]
  %v766 = vld [vmem:[%s1 + $0x90] sm:$0xff]
  %v767 = vld [vmem:[%s1 + $0x98] sm:$0xff]
  %v788 = vunpack.c.l.b16 %v748
  %v789 = vunpack.c.h.b16 %v748
  %v790 = vunpack.c.l.b16 %v749
  %v791 = vunpack.c.h.b16 %v749
  %v792 = vunpack.c.l.b16 %v750
  %v793 = vunpack.c.h.b16 %v750
  %v794 = vunpack.c.l.b16 %v751
  %v795 = vunpack.c.h.b16 %v751
  %v796 = vunpack.c.l.b16 %v752
  %v797 = vunpack.c.h.b16 %v752
  %v798 = vunpack.c.l.b16 %v753
  %v799 = vunpack.c.h.b16 %v753
  %v800 = vunpack.c.l.b16 %v754
  %v801 = vunpack.c.h.b16 %v754
  %v802 = vunpack.c.l.b16 %v755
  %v803 = vunpack.c.h.b16 %v755
  %v804 = vunpack.c.l.b16 %v756
  %v805 = vunpack.c.h.b16 %v756
  %v806 = vunpack.c.l.b16 %v757
  %v807 = vunpack.c.h.b16 %v757
  %v808 = vunpack.c.l.b16 %v758
  %v809 = vunpack.c.h.b16 %v758
  %v810 = vunpack.c.l.b16 %v759
  %v811 = vunpack.c.h.b16 %v759
  %v812 = vunpack.c.l.b16 %v760
  %v813 = vunpack.c.h.b16 %v760
  %v814 = vunpack.c.l.b16 %v761
  %v815 = vunpack.c.h.b16 %v761
  %v816 = vunpack.c.l.b16 %v762
  %v817 = vunpack.c.h.b16 %v762
  %v818 = vunpack.c.l.b16 %v763
  %v819 = vunpack.c.h.b16 %v763
  %v820 = vunpack.c.l.b16 %v764
  %v821 = vunpack.c.h.b16 %v764
  %v822 = vunpack.c.l.b16 %v765
  %v823 = vunpack.c.h.b16 %v765
  %v824 = vunpack.c.l.b16 %v766
  %v825 = vunpack.c.h.b16 %v766
  %v826 = vunpack.c.l.b16 %v767
  %v827 = vunpack.c.h.b16 %v767
  %v828 = vpack.c.b16 %v790, %v788
  %v829 = vpack.c.b16 %v791, %v789
  %v830 = vpack.c.b16 %v794, %v792
  %v831 = vpack.c.b16 %v795, %v793
  %v832 = vpack.c.b16 %v798, %v796
  %v833 = vpack.c.b16 %v799, %v797
  %v834 = vpack.c.b16 %v802, %v800
  %v835 = vpack.c.b16 %v803, %v801
  %v836 = vpack.c.b16 %v806, %v804
  %v837 = vpack.c.b16 %v807, %v805
  %v838 = vpack.c.b16 %v810, %v808
  %v839 = vpack.c.b16 %v811, %v809
  %v840 = vpack.c.b16 %v814, %v812
  %v841 = vpack.c.b16 %v815, %v813
  %v842 = vpack.c.b16 %v818, %v816
  %v843 = vpack.c.b16 %v819, %v817
  %v844 = vpack.c.b16 %v822, %v820
  %v845 = vpack.c.b16 %v823, %v821
  %v846 = vpack.c.b16 %v826, %v824
  %v847 = vpack.c.b16 %v827, %v825
  %v869 = vsel %vm417, %v717, 0
  %v872 = vsel %vm417, %v719, 0
  %v875 = vsel %vm417, %v721, 0
  %v878 = vsel %vm417, %v723, 0
  %v881 = vsel %vm417, %v725, 0
  %v884 = vsel %vm417, %v727, 0
  %v887 = vsel %vm417, %v729, 0
  %v890 = vsel %vm417, %v731, 0
  %v893 = vsel %vm417, %v733, 0
  %v896 = vsel %vm417, %v735, 0
  %v899 = vsel %vm417, %v737, 0
  %v902 = vsel %vm417, %v739, 0
  %v905 = vsel %vm417, %v741, 0
  %v908 = vsel %vm417, %v743, 0
  %v911 = vsel %vm417, %v745, 0
  %v914 = vsel %vm417, %v747, 0
  %916 = vmatprep.subr.bf16.mxu0 %v829
  %917 = vmatpush1.bf16.msra.mxu0 %v828
  %918 = vmatprep.subr.bf16.mxu0 %v831
  %919 = vmatpush1.bf16.msra.mxu0 %v830
  %920 = vmatprep.subr.bf16.mxu0 %v833
  %921 = vmatpush1.bf16.msra.mxu0 %v832
  %922 = vmatprep.subr.bf16.mxu0 %v835
  %923 = vmatpush1.bf16.msra.mxu0 %v834
  %924 = vmatprep.subr.bf16.mxu0 %v837
  %925 = vmatpush1.bf16.msra.mxu0 %v836
  %926 = vmatprep.subr.bf16.mxu0 %v839
  %927 = vmatpush1.bf16.msra.mxu0 %v838
  %928 = vmatprep.subr.bf16.mxu0 %v841
  %929 = vmatpush1.bf16.msra.mxu0 %v840
  %930 = vmatprep.subr.bf16.mxu0 %v843
  %931 = vmatpush1.bf16.msra.mxu0 %v842
  %932 = vmatprep.subr.bf16.mxu0 %v845
  %933 = vmatpush1.bf16.msra.mxu0 %v844
  %934 = vmatprep.subr.bf16.mxu0 %v847
  %935 = vmatpush1.bf16.msra.mxu0 %v846
  %936 = vmatprep.subr.bf16.mxu0 0
  %937 = vmatpush1.bf16.msra.mxu0 0
  %938 = vmatprep.subr.bf16.mxu0 0
  %939 = vmatpush1.bf16.msra.mxu0 0
  %940 = vmatprep.subr.bf16.mxu0 0
  %941 = vmatpush1.bf16.msra.mxu0 0
  %942 = vmatprep.subr.bf16.mxu0 0
  %943 = vmatpush1.bf16.msra.mxu0 0
  %944 = vmatprep.subr.bf16.mxu0 0
  %945 = vmatpush1.bf16.msra.mxu0 0
  %946 = vmatprep.subr.bf16.mxu0 0
  %947 = vmatpush1.bf16.msra.mxu0 0
  %948 = vmatprep.mubr.bf16.mxu0 %v869
  %949 = vmatmul.mubr.bf16.gmra.mrb[0].mxu0 %v716
  %v950 = vpop.f32.mrb[0].mxu0
  %v951 = vadd.f32 0.0, %v950
  %v952 = vpop.f32.mrb[0].mxu0
  %v953 = vadd.f32 0.0, %v952
  %v954 = vpop.f32.mrb[0].mxu0
  %v955 = vadd.f32 0.0, %v954
  %v956 = vpop.f32.mrb[0].mxu0
  %v957 = vadd.f32 0.0, %v956
  %958 = vmatprep.mubr.bf16.mxu0 %v872
  %959 = vmatmul.mubr.bf16.gmra.mrb[0].mxu0 %v718
  %v960 = vpop.f32.mrb[0].mxu0
  %v961 = vadd.f32 0.0, %v960
  %v962 = vpop.f32.mrb[0].mxu0
  %v963 = vadd.f32 0.0, %v962
  %v964 = vpop.f32.mrb[0].mxu0
  %v965 = vadd.f32 0.0, %v964
  %v966 = vpop.f32.mrb[0].mxu0
  %v967 = vadd.f32 0.0, %v966
  %968 = vmatprep.mubr.bf16.mxu0 %v875
  %969 = vmatmul.mubr.bf16.gmra.mrb[0].mxu0 %v720
  %v970 = vpop.f32.mrb[0].mxu0
  %v971 = vadd.f32 0.0, %v970
  %v972 = vpop.f32.mrb[0].mxu0
  %v973 = vadd.f32 0.0, %v972
  %v974 = vpop.f32.mrb[0].mxu0
  %v975 = vadd.f32 0.0, %v974
  %v976 = vpop.f32.mrb[0].mxu0
  %v977 = vadd.f32 0.0, %v976
  %978 = vmatprep.mubr.bf16.mxu0 %v878
  %979 = vmatmul.mubr.bf16.gmra.mrb[0].mxu0 %v722
  %v980 = vpop.f32.mrb[0].mxu0
  %v981 = vadd.f32 0.0, %v980
  %v982 = vpop.f32.mrb[0].mxu0
  %v983 = vadd.f32 0.0, %v982
  %v984 = vpop.f32.mrb[0].mxu0
  %v985 = vadd.f32 0.0, %v984
  %v986 = vpop.f32.mrb[0].mxu0
  %v987 = vadd.f32 0.0, %v986
  %988 = vmatprep.mubr.bf16.mxu0 %v881
  %989 = vmatmul.mubr.bf16.gmra.mrb[0].mxu0 %v724
  %v990 = vpop.f32.mrb[0].mxu0
  %v991 = vadd.f32 0.0, %v990
  %v992 = vpop.f32.mrb[0].mxu0
  %v993 = vadd.f32 0.0, %v992
  %v994 = vpop.f32.mrb[0].mxu0
  %v995 = vadd.f32 0.0, %v994
  %v996 = vpop.f32.mrb[0].mxu0
  %v997 = vadd.f32 0.0, %v996
  %998 = vmatprep.mubr.bf16.mxu0 %v884
  %999 = vmatmul.mubr.bf16.gmra.mrb[0].mxu0 %v726
  %v1000 = vpop.f32.mrb[0].mxu0
  %v1001 = vadd.f32 0.0, %v1000
  %v1002 = vpop.f32.mrb[0].mxu0
  %v1003 = vadd.f32 0.0, %v1002
  %v1004 = vpop.f32.mrb[0].mxu0
  %v1005 = vadd.f32 0.0, %v1004
  %v1006 = vpop.f32.mrb[0].mxu0
  %v1007 = vadd.f32 0.0, %v1006
  %1008 = vmatprep.mubr.bf16.mxu0 %v887
  %1009 = vmatmul.mubr.bf16.gmra.mrb[0].mxu0 %v728
  %v1010 = vpop.f32.mrb[0].mxu0
  %v1011 = vadd.f32 0.0, %v1010
  %v1012 = vpop.f32.mrb[0].mxu0
  %v1013 = vadd.f32 0.0, %v1012
  %v1014 = vpop.f32.mrb[0].mxu0
  %v1015 = vadd.f32 0.0, %v1014
  %v1016 = vpop.f32.mrb[0].mxu0
  %v1017 = vadd.f32 0.0, %v1016
  %1018 = vmatprep.mubr.bf16.mxu0 %v890
  %1019 = vmatmul.mubr.bf16.gmra.mrb[0].mxu0 %v730
  %v1020 = vpop.f32.mrb[0].mxu0
  %v1021 = vadd.f32 0.0, %v1020
  %v1022 = vpop.f32.mrb[0].mxu0
  %v1023 = vadd.f32 0.0, %v1022
  %v1024 = vpop.f32.mrb[0].mxu0
  %v1025 = vadd.f32 0.0, %v1024
  %v1026 = vpop.f32.mrb[0].mxu0
  %v1027 = vadd.f32 0.0, %v1026
  %1028 = vmatprep.mubr.bf16.mxu0 %v893
  %1029 = vmatmul.mubr.bf16.gmra.mrb[0].mxu0 %v732
  %v1030 = vpop.f32.mrb[0].mxu0
  %v1031 = vadd.f32 0.0, %v1030
  %v1032 = vpop.f32.mrb[0].mxu0
  %v1033 = vadd.f32 0.0, %v1032
  %v1034 = vpop.f32.mrb[0].mxu0
  %v1035 = vadd.f32 0.0, %v1034
  %v1036 = vpop.f32.mrb[0].mxu0
  %v1037 = vadd.f32 0.0, %v1036
  %1038 = vmatprep.mubr.bf16.mxu0 %v896
  %1039 = vmatmul.mubr.bf16.gmra.mrb[0].mxu0 %v734
  %v1040 = vpop.f32.mrb[0].mxu0
  %v1041 = vadd.f32 0.0, %v1040
  %v1042 = vpop.f32.mrb[0].mxu0
  %v1043 = vadd.f32 0.0, %v1042
  %v1044 = vpop.f32.mrb[0].mxu0
  %v1045 = vadd.f32 0.0, %v1044
  %v1046 = vpop.f32.mrb[0].mxu0
  %v1047 = vadd.f32 0.0, %v1046
  %1048 = vmatprep.mubr.bf16.mxu0 %v899
  %1049 = vmatmul.mubr.bf16.gmra.mrb[0].mxu0 %v736
  %v1050 = vpop.f32.mrb[0].mxu0
  %v1051 = vadd.f32 0.0, %v1050
  %v1052 = vpop.f32.mrb[0].mxu0
  %v1053 = vadd.f32 0.0, %v1052
  %v1054 = vpop.f32.mrb[0].mxu0
  %v1055 = vadd.f32 0.0, %v1054
  %v1056 = vpop.f32.mrb[0].mxu0
  %v1057 = vadd.f32 0.0, %v1056
  %1058 = vmatprep.mubr.bf16.mxu0 %v902
  %1059 = vmatmul.mubr.bf16.gmra.mrb[0].mxu0 %v738
  %v1060 = vpop.f32.mrb[0].mxu0
  %v1061 = vadd.f32 0.0, %v1060
  %v1062 = vpop.f32.mrb[0].mxu0
  %v1063 = vadd.f32 0.0, %v1062
  %v1064 = vpop.f32.mrb[0].mxu0
  %v1065 = vadd.f32 0.0, %v1064
  %v1066 = vpop.f32.mrb[0].mxu0
  %v1067 = vadd.f32 0.0, %v1066
  %1068 = vmatprep.mubr.bf16.mxu0 %v905
  %1069 = vmatmul.mubr.bf16.gmra.mrb[0].mxu0 %v740
  %v1070 = vpop.f32.mrb[0].mxu0
  %v1071 = vadd.f32 0.0, %v1070
  %v1072 = vpop.f32.mrb[0].mxu0
  %v1073 = vadd.f32 0.0, %v1072
  %v1074 = vpop.f32.mrb[0].mxu0
  %v1075 = vadd.f32 0.0, %v1074
  %v1076 = vpop.f32.mrb[0].mxu0
  %v1077 = vadd.f32 0.0, %v1076
  %1078 = vmatprep.mubr.bf16.mxu0 %v908
  %1079 = vmatmul.mubr.bf16.gmra.mrb[0].mxu0 %v742
  %v1080 = vpop.f32.mrb[0].mxu0
  %v1081 = vadd.f32 0.0, %v1080
  %v1082 = vpop.f32.mrb[0].mxu0
  %v1083 = vadd.f32 0.0, %v1082
  %v1084 = vpop.f32.mrb[0].mxu0
  %v1085 = vadd.f32 0.0, %v1084
  %v1086 = vpop.f32.mrb[0].mxu0
  %v1087 = vadd.f32 0.0, %v1086
  %1088 = vmatprep.mubr.bf16.mxu0 %v911
  %1089 = vmatmul.mubr.bf16.gmra.mrb[0].mxu0 %v744
  %v1090 = vpop.f32.mrb[0].mxu0
  %v1091 = vadd.f32 0.0, %v1090
  %v1092 = vpop.f32.mrb[0].mxu0
  %v1093 = vadd.f32 0.0, %v1092
  %v1094 = vpop.f32.mrb[0].mxu0
  %v1095 = vadd.f32 0.0, %v1094
  %v1096 = vpop.f32.mrb[0].mxu0
  %v1097 = vadd.f32 0.0, %v1096
  %1098 = vmatprep.mubr.bf16.mxu0 %v914
  %1099 = vmatmul.mubr.bf16.gmra.mrb[0].mxu0 %v746
  %v1100 = vpop.f32.mrb[0].mxu0
  %v1101 = vadd.f32 0.0, %v1100
  %v1102 = vpop.f32.mrb[0].mxu0
  %v1103 = vadd.f32 0.0, %v1102
  %v1104 = vpop.f32.mrb[0].mxu0
  %v1105 = vadd.f32 0.0, %v1104
  %v1106 = vpop.f32.mrb[0].mxu0
  %v1107 = vadd.f32 0.0, %v1106
  %1108 = vdwg.mxu0
  %v1109 = vmax.f32 %v951, %v1031
  %v1110 = vmax.f32 %v953, %v1033
  %v1111 = vmax.f32 %v955, %v1035
  %v1112 = vmax.f32 %v957, %v1037
  %v1113 = vmax.f32 %v961, %v1041
  %v1114 = vmax.f32 %v963, %v1043
  %v1115 = vmax.f32 %v965, %v1045
  %v1116 = vmax.f32 %v967, %v1047
  %v1117 = vmax.f32 %v971, %v1051
  %v1118 = vmax.f32 %v973, %v1053
  %v1119 = vmax.f32 %v975, %v1055
  %v1120 = vmax.f32 %v977, %v1057
  %v1121 = vmax.f32 %v981, %v1061
  %v1122 = vmax.f32 %v983, %v1063
  %v1123 = vmax.f32 %v985, %v1065
  %v1124 = vmax.f32 %v987, %v1067
  %v1125 = vmax.f32 %v991, %v1071
  %v1126 = vmax.f32 %v993, %v1073
  %v1127 = vmax.f32 %v995, %v1075
  %v1128 = vmax.f32 %v997, %v1077
  %v1129 = vmax.f32 %v1001, %v1081
  %v1130 = vmax.f32 %v1003, %v1083
  %v1131 = vmax.f32 %v1005, %v1085
  %v1132 = vmax.f32 %v1007, %v1087
  %v1133 = vmax.f32 %v1011, %v1091
  %v1134 = vmax.f32 %v1013, %v1093
  %v1135 = vmax.f32 %v1015, %v1095
  %v1136 = vmax.f32 %v1017, %v1097
  %v1137 = vmax.f32 %v1021, %v1101
  %v1138 = vmax.f32 %v1023, %v1103
  %v1139 = vmax.f32 %v1025, %v1105
  %v1140 = vmax.f32 %v1027, %v1107
  %1173 = vrot.lane.b32.xlu0 %v1109, 56
  %v1174 = vpop.permute.xlu0 %1173
  %1175 = vrot.lane.b32.xlu0 %v1110, 56
  %v1176 = vpop.permute.xlu0 %1175
  %1177 = vrot.lane.b32.xlu0 %v1111, 56
  %v1178 = vpop.permute.xlu0 %1177
  %1179 = vrot.lane.b32.xlu0 %v1112, 56
  %v1180 = vpop.permute.xlu0 %1179
  %1181 = vrot.lane.b32.xlu0 %v1113, 56
  %v1182 = vpop.permute.xlu0 %1181
  %1183 = vrot.lane.b32.xlu0 %v1114, 56
  %v1184 = vpop.permute.xlu0 %1183
  %1185 = vrot.lane.b32.xlu0 %v1115, 56
  %v1186 = vpop.permute.xlu0 %1185
  %1187 = vrot.lane.b32.xlu0 %v1116, 56
  %v1188 = vpop.permute.xlu0 %1187
  %1189 = vrot.lane.b32.xlu0 %v1117, 56
  %v1190 = vpop.permute.xlu0 %1189
  %1191 = vrot.lane.b32.xlu0 %v1118, 56
  %v1192 = vpop.permute.xlu0 %1191
  %1193 = vrot.lane.b32.xlu0 %v1119, 56
  %v1194 = vpop.permute.xlu0 %1193
  %1195 = vrot.lane.b32.xlu0 %v1120, 56
  %v1196 = vpop.permute.xlu0 %1195
  %1197 = vrot.lane.b32.xlu0 %v1121, 56
  %v1198 = vpop.permute.xlu0 %1197
  %1199 = vrot.lane.b32.xlu0 %v1122, 56
  %v1200 = vpop.permute.xlu0 %1199
  %1201 = vrot.lane.b32.xlu0 %v1123, 56
  %v1202 = vpop.permute.xlu0 %1201
  %1203 = vrot.lane.b32.xlu0 %v1124, 56
  %v1204 = vpop.permute.xlu0 %1203
  %1205 = vrot.lane.b32.xlu0 %v1125, 56
  %v1206 = vpop.permute.xlu0 %1205
  %1207 = vrot.lane.b32.xlu0 %v1126, 56
  %v1208 = vpop.permute.xlu0 %1207
  %1209 = vrot.lane.b32.xlu0 %v1127, 56
  %v1210 = vpop.permute.xlu0 %1209
  %1211 = vrot.lane.b32.xlu0 %v1128, 56
  %v1212 = vpop.permute.xlu0 %1211
  %1213 = vrot.lane.b32.xlu0 %v1129, 56
  %v1214 = vpop.permute.xlu0 %1213
  %1215 = vrot.lane.b32.xlu0 %v1130, 56
  %v1216 = vpop.permute.xlu0 %1215
  %1217 = vrot.lane.b32.xlu0 %v1131, 56
  %v1218 = vpop.permute.xlu0 %1217
  %1219 = vrot.lane.b32.xlu0 %v1132, 56
  %v1220 = vpop.permute.xlu0 %1219
  %1221 = vrot.lane.b32.xlu0 %v1133, 56
  %v1222 = vpop.permute.xlu0 %1221
  %1223 = vrot.lane.b32.xlu0 %v1134, 56
  %v1224 = vpop.permute.xlu0 %1223
  %1225 = vrot.lane.b32.xlu0 %v1135, 56
  %v1226 = vpop.permute.xlu0 %1225
  %1227 = vrot.lane.b32.xlu0 %v1136, 56
  %v1228 = vpop.permute.xlu0 %1227
  %1229 = vrot.lane.b32.xlu0 %v1137, 56
  %v1230 = vpop.permute.xlu0 %1229
  %1231 = vrot.lane.b32.xlu0 %v1138, 56
  %v1232 = vpop.permute.xlu0 %1231
  %1233 = vrot.lane.b32.xlu0 %v1139, 56
  %v1234 = vpop.permute.xlu0 %1233
  %1235 = vrot.lane.b32.xlu0 %v1140, 56
  %v1236 = vpop.permute.xlu0 %1235
  %vm1237 = vcmask 457728
  %v1238 = vsel %vm1237, %v1174, %v1176
  %v1239 = vsel %vm1237, %v1178, %v1180
  %v1240 = vsel %vm1237, %v1182, %v1184
  %v1241 = vsel %vm1237, %v1186, %v1188
  %v1242 = vsel %vm1237, %v1190, %v1192
  %v1243 = vsel %vm1237, %v1194, %v1196
  %v1244 = vsel %vm1237, %v1198, %v1200
  %v1245 = vsel %vm1237, %v1202, %v1204
  %v1246 = vsel %vm1237, %v1206, %v1208
  %v1247 = vsel %vm1237, %v1210, %v1212
  %v1248 = vsel %vm1237, %v1214, %v1216
  %v1249 = vsel %vm1237, %v1218, %v1220
  %v1250 = vsel %vm1237, %v1222, %v1224
  %v1251 = vsel %vm1237, %v1226, %v1228
  %v1252 = vsel %vm1237, %v1230, %v1232
  %v1253 = vsel %vm1237, %v1234, %v1236
  %v1270 = vmax.f32 %v1109, %v1238
  %v1271 = vmax.f32 %v1111, %v1239
  %v1272 = vmax.f32 %v1113, %v1240
  %v1273 = vmax.f32 %v1115, %v1241
  %v1274 = vmax.f32 %v1117, %v1242
  %v1275 = vmax.f32 %v1119, %v1243
  %v1276 = vmax.f32 %v1121, %v1244
  %v1277 = vmax.f32 %v1123, %v1245
  %v1278 = vmax.f32 %v1125, %v1246
  %v1279 = vmax.f32 %v1127, %v1247
  %v1280 = vmax.f32 %v1129, %v1248
  %v1281 = vmax.f32 %v1131, %v1249
  %v1282 = vmax.f32 %v1133, %v1250
  %v1283 = vmax.f32 %v1135, %v1251
  %v1284 = vmax.f32 %v1137, %v1252
  %v1285 = vmax.f32 %v1139, %v1253
  %v1286 = vld [vmem:[%s2] sm:$0x1]
  %v1288 = vlaneseq
  %v1289 = vshrl.u32 %v1288, 7
  %v1290 = vsub.s32 0, %v1289
  %v1291 = vrot.slane %v1286, %v1290
  %v1293 = vadd.f32 %v1270, %v1291
  %v1294 = vadd.f32 %v1271, %v1291
  %v1295 = vadd.f32 %v1272, %v1291
  %v1296 = vadd.f32 %v1273, %v1291
  %v1297 = vadd.f32 %v1274, %v1291
  %v1298 = vadd.f32 %v1275, %v1291
  %v1299 = vadd.f32 %v1276, %v1291
  %v1300 = vadd.f32 %v1277, %v1291
  %v1301 = vadd.f32 %v1278, %v1291
  %v1302 = vadd.f32 %v1279, %v1291
  %v1303 = vadd.f32 %v1280, %v1291
  %v1304 = vadd.f32 %v1281, %v1291
  %v1305 = vadd.f32 %v1282, %v1291
  %v1306 = vadd.f32 %v1283, %v1291
  %v1307 = vadd.f32 %v1284, %v1291
  %v1308 = vadd.f32 %v1285, %v1291
  %v1309 = vmax.f32 %v1293, 0.0
  %v1310 = vmax.f32 %v1294, 0.0
  %v1311 = vmax.f32 %v1295, 0.0
  %v1312 = vmax.f32 %v1296, 0.0
  %v1313 = vmax.f32 %v1297, 0.0
  %v1314 = vmax.f32 %v1298, 0.0
  %v1315 = vmax.f32 %v1299, 0.0
  %v1316 = vmax.f32 %v1300, 0.0
  %v1317 = vmax.f32 %v1301, 0.0
  %v1318 = vmax.f32 %v1302, 0.0
  %v1319 = vmax.f32 %v1303, 0.0
  %v1320 = vmax.f32 %v1304, 0.0
  %v1321 = vmax.f32 %v1305, 0.0
  %v1322 = vmax.f32 %v1306, 0.0
  %v1323 = vmax.f32 %v1307, 0.0
  %v1324 = vmax.f32 %v1308, 0.0
  %v1325 = vpack.c.bf16 %v1310, %v1309
  %v1326 = vpack.c.bf16 %v1312, %v1311
  %v1327 = vpack.c.bf16 %v1314, %v1313
  %v1328 = vpack.c.bf16 %v1316, %v1315
  %v1329 = vpack.c.bf16 %v1318, %v1317
  %v1330 = vpack.c.bf16 %v1320, %v1319
  %v1331 = vpack.c.bf16 %v1322, %v1321
  %v1332 = vpack.c.bf16 %v1324, %v1323
  %v1333 = vld [vmem:[%s3] sm:$0xff]
  %v1334 = vld [vmem:[%s3 + $0x8] sm:$0xff]
  %v1335 = vld [vmem:[%s3 + $0x10] sm:$0xf]
  %v1336 = vld [vmem:[%s3 + $0x14] sm:$0xff]
  %v1337 = vld [vmem:[%s3 + $0x1c] sm:$0xff]
  %v1338 = vld [vmem:[%s3 + $0x24] sm:$0xf]
  %v1339 = vld [vmem:[%s3 + $0x28] sm:$0xff]
  %v1340 = vld [vmem:[%s3 + $0x30] sm:$0xff]
  %v1341 = vld [vmem:[%s3 + $0x38] sm:$0xf]
  %v1342 = vld [vmem:[%s3 + $0x3c] sm:$0xff]
  %v1343 = vld [vmem:[%s3 + $0x44] sm:$0xff]
  %v1344 = vld [vmem:[%s3 + $0x4c] sm:$0xf]
  %v1345 = vld [vmem:[%s3 + $0x50] sm:$0xff]
  %v1346 = vld [vmem:[%s3 + $0x58] sm:$0xff]
  %v1347 = vld [vmem:[%s3 + $0x60] sm:$0xf]
  %v1348 = vld [vmem:[%s3 + $0x64] sm:$0xff]
  %v1349 = vld [vmem:[%s3 + $0x6c] sm:$0xff]
  %v1350 = vld [vmem:[%s3 + $0x74] sm:$0xf]
  %v1351 = vld [vmem:[%s3 + $0x78] sm:$0xff]
  %v1352 = vld [vmem:[%s3 + $0x80] sm:$0xff]
  %v1353 = vld [vmem:[%s3 + $0x88] sm:$0xf]
  %v1354 = vld [vmem:[%s3 + $0x8c] sm:$0xff]
  %v1355 = vld [vmem:[%s3 + $0x94] sm:$0xff]
  %v1356 = vld [vmem:[%s3 + $0x9c] sm:$0xf]
  %v1357 = vld [vmem:[%s3 + $0xa0] sm:$0xff]
  %v1358 = vld [vmem:[%s3 + $0xa8] sm:$0xff]
  %v1359 = vld [vmem:[%s3 + $0xb0] sm:$0xf]
  %v1387 = vunpack.c.l.b16 %v1333
  %v1388 = vunpack.c.h.b16 %v1333
  %v1389 = vunpack.c.l.b16 %v1334
  %v1390 = vunpack.c.h.b16 %v1334
  %v1391 = vunpack.c.l.b16 %v1335
  %v1392 = vunpack.c.l.b16 %v1336
  %v1393 = vunpack.c.h.b16 %v1336
  %v1394 = vunpack.c.l.b16 %v1337
  %v1395 = vunpack.c.h.b16 %v1337
  %v1396 = vunpack.c.l.b16 %v1338
  %v1397 = vunpack.c.l.b16 %v1339
  %v1398 = vunpack.c.h.b16 %v1339
  %v1399 = vunpack.c.l.b16 %v1340
  %v1400 = vunpack.c.h.b16 %v1340
  %v1401 = vunpack.c.l.b16 %v1341
  %v1402 = vunpack.c.l.b16 %v1342
  %v1403 = vunpack.c.h.b16 %v1342
  %v1404 = vunpack.c.l.b16 %v1343
  %v1405 = vunpack.c.h.b16 %v1343
  %v1406 = vunpack.c.l.b16 %v1344
  %v1407 = vunpack.c.l.b16 %v1345
  %v1408 = vunpack.c.h.b16 %v1345
  %v1409 = vunpack.c.l.b16 %v1346
  %v1410 = vunpack.c.h.b16 %v1346
  %v1411 = vunpack.c.l.b16 %v1347
  %v1412 = vunpack.c.l.b16 %v1348
  %v1413 = vunpack.c.h.b16 %v1348
  %v1414 = vunpack.c.l.b16 %v1349
  %v1415 = vunpack.c.h.b16 %v1349
  %v1416 = vunpack.c.l.b16 %v1350
  %v1417 = vunpack.c.l.b16 %v1351
  %v1418 = vunpack.c.h.b16 %v1351
  %v1419 = vunpack.c.l.b16 %v1352
  %v1420 = vunpack.c.h.b16 %v1352
  %v1421 = vunpack.c.l.b16 %v1353
  %v1422 = vunpack.c.l.b16 %v1354
  %v1423 = vunpack.c.h.b16 %v1354
  %v1424 = vunpack.c.l.b16 %v1355
  %v1425 = vunpack.c.h.b16 %v1355
  %v1426 = vunpack.c.l.b16 %v1356
  %v1427 = vunpack.c.l.b16 %v1357
  %v1428 = vunpack.c.h.b16 %v1357
  %v1429 = vunpack.c.l.b16 %v1358
  %v1430 = vunpack.c.h.b16 %v1358
  %v1431 = vunpack.c.l.b16 %v1359
  %v1432 = vpack.c.b16 %v1392, %v1387
  %v1433 = vpack.c.b16 %v1393, %v1388
  %v1434 = vpack.c.b16 %v1394, %v1389
  %v1435 = vpack.c.b16 %v1395, %v1390
  %v1436 = vpack.c.b16 %v1396, %v1391
  %v1437 = vpack.c.b16 %v1402, %v1397
  %v1438 = vpack.c.b16 %v1403, %v1398
  %v1439 = vpack.c.b16 %v1404, %v1399
  %v1440 = vpack.c.b16 %v1405, %v1400
  %v1441 = vpack.c.b16 %v1406, %v1401
  %v1442 = vpack.c.b16 %v1412, %v1407
  %v1443 = vpack.c.b16 %v1413, %v1408
  %v1444 = vpack.c.b16 %v1414, %v1409
  %v1445 = vpack.c.b16 %v1415, %v1410
  %v1446 = vpack.c.b16 %v1416, %v1411
  %v1447 = vpack.c.b16 %v1422, %v1417
  %v1448 = vpack.c.b16 %v1423, %v1418
  %v1449 = vpack.c.b16 %v1424, %v1419
  %v1450 = vpack.c.b16 %v1425, %v1420
  %v1451 = vpack.c.b16 %v1426, %v1421
  %v1452 = vpack.c.b16 %v1427, %v1427
  %v1453 = vpack.c.b16 %v1428, %v1428
  %v1454 = vpack.c.b16 %v1429, %v1429
  %v1455 = vpack.c.b16 %v1430, %v1430
  %v1456 = vpack.c.b16 %v1431, %v1431
  %vm1477 = vcmask 588800
  %v1479 = vsel %vm1477, %v1325, 0
  %v1482 = vsel %vm1477, %v1326, 0
  %v1485 = vsel %vm1477, %v1327, 0
  %v1488 = vsel %vm1477, %v1328, 0
  %v1491 = vsel %vm1477, %v1329, 0
  %v1494 = vsel %vm1477, %v1330, 0
  %v1497 = vsel %vm1477, %v1331, 0
  %v1500 = vsel %vm1477, %v1332, 0
  %vm1502 = vcmask 1043456
  %v1504 = vsel %vm1502, %v1452, 0
  %v1507 = vsel %vm1502, %v1453, 0
  %v1510 = vsel %vm1502, %v1454, 0
  %v1513 = vsel %vm1502, %v1455, 0
  %v1516 = vsel %vm1502, %v1456, 0
  %1518 = vmatprep.subr.bf16.mxu0 %v1433
  %1519 = vmatpush1.bf16.msra.mxu0 %v1432
  %1520 = vmatprep.subr.bf16.mxu0 %v1438
  %1521 = vmatpush1.bf16.msra.mxu0 %v1437
  %1522 = vmatprep.subr.bf16.mxu0 %v1443
  %1523 = vmatpush1.bf16.msra.mxu0 %v1442
  %1524 = vmatprep.subr.bf16.mxu0 %v1448
  %1525 = vmatpush1.bf16.msra.mxu0 %v1447
  %1526 = vmatprep.subr.bf16.mxu0 %v1507
  %1527 = vmatpush1.bf16.msra.mxu0 %v1504
  %1528 = vmatprep.subr.bf16.mxu0 0
  %1529 = vmatpush1.bf16.msra.mxu0 0
  %1530 = vmatprep.subr.bf16.mxu0 0
  %1531 = vmatpush1.bf16.msra.mxu0 0
  %1532 = vmatprep.subr.bf16.mxu0 0
  %1533 = vmatpush1.bf16.msra.mxu0 0
  %1534 = vmatprep.subr.bf16.mxu0 0
  %1535 = vmatpush1.bf16.msra.mxu0 0
  %1536 = vmatprep.subr.bf16.mxu0 0
  %1537 = vmatpush1.bf16.msra.mxu0 0
  %1538 = vmatprep.subr.bf16.mxu0 0
  %1539 = vmatpush1.bf16.msra.mxu0 0
  %1540 = vmatprep.subr.bf16.mxu0 0
  %1541 = vmatpush1.bf16.msra.mxu0 0
  %1542 = vmatprep.subr.bf16.mxu0 0
  %1543 = vmatpush1.bf16.msra.mxu0 0
  %1544 = vmatprep.subr.bf16.mxu0 0
  %1545 = vmatpush1.bf16.msra.mxu0 0
  %1546 = vmatprep.subr.bf16.mxu0 0
  %1547 = vmatpush1.bf16.msra.mxu0 0
  %1548 = vmatprep.subr.bf16.mxu0 0
  %1549 = vmatpush1.bf16.msra.mxu0 0
  %1550 = vmatprep.mubr.bf16.mxu0 0
  %1551 = vmatmul.mubr.bf16.gmra.mrb[0].mxu0 %v1479
  %v1552 = vpop.f32.mrb[0].mxu0
  %v1553 = vadd.f32 0.0, %v1552
  %v1554 = vpop.f32.mrb[0].mxu0
  %v1555 = vadd.f32 0.0, %v1554
  %v1556 = vpop.f32.mrb[0].mxu0
  %v1557 = vpop.f32.mrb[0].mxu0
  %v1558 = vadd.f32 0.0, %v1557
  %1559 = vmatprep.mubr.bf16.mxu0 0
  %1560 = vmatmul.mubr.bf16.gmra.mrb[0].mxu0 %v1482
  %v1561 = vpop.f32.mrb[0].mxu0
  %v1562 = vadd.f32 0.0, %v1561
  %v1563 = vpop.f32.mrb[0].mxu0
  %v1564 = vadd.f32 0.0, %v1563
  %v1565 = vpop.f32.mrb[0].mxu0
  %v1566 = vpop.f32.mrb[0].mxu0
  %v1567 = vadd.f32 0.0, %v1566
  %1568 = vmatprep.mubr.bf16.mxu0 0
  %1569 = vmatmul.mubr.bf16.gmra.mrb[0].mxu0 %v1485
  %v1570 = vpop.f32.mrb[0].mxu0
  %v1571 = vadd.f32 0.0, %v1570
  %v1572 = vpop.f32.mrb[0].mxu0
  %v1573 = vadd.f32 0.0, %v1572
  %v1574 = vpop.f32.mrb[0].mxu0
  %v1575 = vpop.f32.mrb[0].mxu0
  %v1576 = vadd.f32 0.0, %v1575
  %1577 = vmatprep.mubr.bf16.mxu0 0
  %1578 = vmatmul.mubr.bf16.gmra.mrb[0].mxu0 %v1488
  %v1579 = vpop.f32.mrb[0].mxu0
  %v1580 = vadd.f32 0.0, %v1579
  %v1581 = vpop.f32.mrb[0].mxu0
  %v1582 = vadd.f32 0.0, %v1581
  %v1583 = vpop.f32.mrb[0].mxu0
  %v1584 = vpop.f32.mrb[0].mxu0
  %v1585 = vadd.f32 0.0, %v1584
  %1586 = vmatprep.mubr.bf16.mxu0 0
  %1587 = vmatmul.mubr.bf16.gmra.mrb[0].mxu0 %v1491
  %v1588 = vpop.f32.mrb[0].mxu0
  %v1589 = vadd.f32 0.0, %v1588
  %v1590 = vpop.f32.mrb[0].mxu0
  %v1591 = vadd.f32 0.0, %v1590
  %v1592 = vpop.f32.mrb[0].mxu0
  %v1593 = vpop.f32.mrb[0].mxu0
  %v1594 = vadd.f32 0.0, %v1593
  %1595 = vmatprep.mubr.bf16.mxu0 0
  %1596 = vmatmul.mubr.bf16.gmra.mrb[0].mxu0 %v1494
  %v1597 = vpop.f32.mrb[0].mxu0
  %v1598 = vadd.f32 0.0, %v1597
  %v1599 = vpop.f32.mrb[0].mxu0
  %v1600 = vadd.f32 0.0, %v1599
  %v1601 = vpop.f32.mrb[0].mxu0
  %v1602 = vpop.f32.mrb[0].mxu0
  %v1603 = vadd.f32 0.0, %v1602
  %1604 = vmatprep.mubr.bf16.mxu0 0
  %1605 = vmatmul.mubr.bf16.gmra.mrb[0].mxu0 %v1497
  %v1606 = vpop.f32.mrb[0].mxu0
  %v1607 = vadd.f32 0.0, %v1606
  %v1608 = vpop.f32.mrb[0].mxu0
  %v1609 = vadd.f32 0.0, %v1608
  %v1610 = vpop.f32.mrb[0].mxu0
  %v1611 = vpop.f32.mrb[0].mxu0
  %v1612 = vadd.f32 0.0, %v1611
  %1613 = vmatprep.mubr.bf16.mxu0 0
  %1614 = vmatmul.mubr.bf16.gmra.mrb[0].mxu0 %v1500
  %v1615 = vpop.f32.mrb[0].mxu0
  %v1616 = vadd.f32 0.0, %v1615
  %v1617 = vpop.f32.mrb[0].mxu0
  %v1618 = vadd.f32 0.0, %v1617
  %v1619 = vpop.f32.mrb[0].mxu0
  %v1620 = vpop.f32.mrb[0].mxu0
  %v1621 = vadd.f32 0.0, %v1620
  %1622 = vdwg.mxu0
  %1623 = vmatprep.subr.bf16.mxu0 %v1435
  %1624 = vmatpush1.bf16.msra.mxu0 %v1434
  %1625 = vmatprep.subr.bf16.mxu0 %v1440
  %1626 = vmatpush1.bf16.msra.mxu0 %v1439
  %1627 = vmatprep.subr.bf16.mxu0 %v1445
  %1628 = vmatpush1.bf16.msra.mxu0 %v1444
  %1629 = vmatprep.subr.bf16.mxu0 %v1450
  %1630 = vmatpush1.bf16.msra.mxu0 %v1449
  %1631 = vmatprep.subr.bf16.mxu0 %v1513
  %1632 = vmatpush1.bf16.msra.mxu0 %v1510
  %1633 = vmatprep.subr.bf16.mxu0 0
  %1634 = vmatpush1.bf16.msra.mxu0 0
  %1635 = vmatprep.subr.bf16.mxu0 0
  %1636 = vmatpush1.bf16.msra.mxu0 0
  %1637 = vmatprep.subr.bf16.mxu0 0
  %1638 = vmatpush1.bf16.msra.mxu0 0
  %1639 = vmatprep.subr.bf16.mxu0 0
  %1640 = vmatpush1.bf16.msra.mxu0 0
  %1641 = vmatprep.subr.bf16.mxu0 0
  %1642 = vmatpush1.bf16.msra.mxu0 0
  %1643 = vmatprep.subr.bf16.mxu0 0
  %1644 = vmatpush1.bf16.msra.mxu0 0
  %1645 = vmatprep.subr.bf16.mxu0 0
  %1646 = vmatpush1.bf16.msra.mxu0 0
  %1647 = vmatprep.subr.bf16.mxu0 0
  %1648 = vmatpush1.bf16.msra.mxu0 0
  %1649 = vmatprep.subr.bf16.mxu0 0
  %1650 = vmatpush1.bf16.msra.mxu0 0
  %1651 = vmatprep.subr.bf16.mxu0 0
  %1652 = vmatpush1.bf16.msra.mxu0 0
  %1653 = vmatprep.subr.bf16.mxu0 0
  %1654 = vmatpush1.bf16.msra.mxu0 0
  %1655 = vmatprep.mubr.bf16.mxu0 0
  %1656 = vmatmul.mubr.bf16.gmra.mrb[0].mxu0 %v1479
  %v1657 = vpop.f32.mrb[0].mxu0
  %v1658 = vadd.f32 0.0, %v1657
  %v1659 = vpop.f32.mrb[0].mxu0
  %v1660 = vadd.f32 0.0, %v1659
  %v1661 = vpop.f32.mrb[0].mxu0
  %v1662 = vadd.f32 0.0, %v1661
  %v1663 = vpop.f32.mrb[0].mxu0
  %v1664 = vadd.f32 0.0, %v1663
  %1665 = vmatprep.mubr.bf16.mxu0 0
  %1666 = vmatmul.mubr.bf16.gmra.mrb[0].mxu0 %v1482
  %v1667 = vpop.f32.mrb[0].mxu0
  %v1668 = vadd.f32 0.0, %v1667
  %v1669 = vpop.f32.mrb[0].mxu0
  %v1670 = vadd.f32 0.0, %v1669
  %v1671 = vpop.f32.mrb[0].mxu0
  %v1672 = vadd.f32 0.0, %v1671
  %v1673 = vpop.f32.mrb[0].mxu0
  %v1674 = vadd.f32 0.0, %v1673
  %1675 = vmatprep.mubr.bf16.mxu0 0
  %1676 = vmatmul.mubr.bf16.gmra.mrb[0].mxu0 %v1485
  %v1677 = vpop.f32.mrb[0].mxu0
  %v1678 = vadd.f32 0.0, %v1677
  %v1679 = vpop.f32.mrb[0].mxu0
  %v1680 = vadd.f32 0.0, %v1679
  %v1681 = vpop.f32.mrb[0].mxu0
  %v1682 = vadd.f32 0.0, %v1681
  %v1683 = vpop.f32.mrb[0].mxu0
  %v1684 = vadd.f32 0.0, %v1683
  %1685 = vmatprep.mubr.bf16.mxu0 0
  %1686 = vmatmul.mubr.bf16.gmra.mrb[0].mxu0 %v1488
  %v1687 = vpop.f32.mrb[0].mxu0
  %v1688 = vadd.f32 0.0, %v1687
  %v1689 = vpop.f32.mrb[0].mxu0
  %v1690 = vadd.f32 0.0, %v1689
  %v1691 = vpop.f32.mrb[0].mxu0
  %v1692 = vadd.f32 0.0, %v1691
  %v1693 = vpop.f32.mrb[0].mxu0
  %v1694 = vadd.f32 0.0, %v1693
  %1695 = vmatprep.mubr.bf16.mxu0 0
  %1696 = vmatmul.mubr.bf16.gmra.mrb[0].mxu0 %v1491
  %v1697 = vpop.f32.mrb[0].mxu0
  %v1698 = vadd.f32 0.0, %v1697
  %v1699 = vpop.f32.mrb[0].mxu0
  %v1700 = vadd.f32 0.0, %v1699
  %v1701 = vpop.f32.mrb[0].mxu0
  %v1702 = vadd.f32 0.0, %v1701
  %v1703 = vpop.f32.mrb[0].mxu0
  %v1704 = vadd.f32 0.0, %v1703
  %1705 = vmatprep.mubr.bf16.mxu0 0
  %1706 = vmatmul.mubr.bf16.gmra.mrb[0].mxu0 %v1494
  %v1707 = vpop.f32.mrb[0].mxu0
  %v1708 = vadd.f32 0.0, %v1707
  %v1709 = vpop.f32.mrb[0].mxu0
  %v1710 = vadd.f32 0.0, %v1709
  %v1711 = vpop.f32.mrb[0].mxu0
  %v1712 = vadd.f32 0.0, %v1711
  %v1713 = vpop.f32.mrb[0].mxu0
  %v1714 = vadd.f32 0.0, %v1713
  %1715 = vmatprep.mubr.bf16.mxu0 0
  %1716 = vmatmul.mubr.bf16.gmra.mrb[0].mxu0 %v1497
  %v1717 = vpop.f32.mrb[0].mxu0
  %v1718 = vadd.f32 0.0, %v1717
  %v1719 = vpop.f32.mrb[0].mxu0
  %v1720 = vadd.f32 0.0, %v1719
  %v1721 = vpop.f32.mrb[0].mxu0
  %v1722 = vadd.f32 0.0, %v1721
  %v1723 = vpop.f32.mrb[0].mxu0
  %v1724 = vadd.f32 0.0, %v1723
  %1725 = vmatprep.mubr.bf16.mxu0 0
  %1726 = vmatmul.mubr.bf16.gmra.mrb[0].mxu0 %v1500
  %v1727 = vpop.f32.mrb[0].mxu0
  %v1728 = vadd.f32 0.0, %v1727
  %v1729 = vpop.f32.mrb[0].mxu0
  %v1730 = vadd.f32 0.0, %v1729
  %v1731 = vpop.f32.mrb[0].mxu0
  %v1732 = vadd.f32 0.0, %v1731
  %v1733 = vpop.f32.mrb[0].mxu0
  %v1734 = vadd.f32 0.0, %v1733
  %1735 = vdwg.mxu0
  %1736 = vmatprep.subr.bf16.mxu0 0
  %1737 = vmatpush1.bf16.msra.mxu0 %v1436
  %1738 = vmatprep.subr.bf16.mxu0 0
  %1739 = vmatpush1.bf16.msra.mxu0 %v1441
  %1740 = vmatprep.subr.bf16.mxu0 0
  %1741 = vmatpush1.bf16.msra.mxu0 %v1446
  %1742 = vmatprep.subr.bf16.mxu0 0
  %1743 = vmatpush1.bf16.msra.mxu0 %v1451
  %1744 = vmatprep.subr.bf16.mxu0 0
  %1745 = vmatpush1.bf16.msra.mxu0 %v1516
  %1746 = vmatprep.subr.bf16.mxu0 0
  %1747 = vmatpush1.bf16.msra.mxu0 0
  %1748 = vmatprep.subr.bf16.mxu0 0
  %1749 = vmatpush1.bf16.msra.mxu0 0
  %1750 = vmatprep.subr.bf16.mxu0 0
  %1751 = vmatpush1.bf16.msra.mxu0 0
  %1752 = vmatprep.subr.bf16.mxu0 0
  %1753 = vmatpush1.bf16.msra.mxu0 0
  %1754 = vmatprep.subr.bf16.mxu0 0
  %1755 = vmatpush1.bf16.msra.mxu0 0
  %1756 = vmatprep.subr.bf16.mxu0 0
  %1757 = vmatpush1.bf16.msra.mxu0 0
  %1758 = vmatprep.subr.bf16.mxu0 0
  %1759 = vmatpush1.bf16.msra.mxu0 0
  %1760 = vmatprep.subr.bf16.mxu0 0
  %1761 = vmatpush1.bf16.msra.mxu0 0
  %1762 = vmatprep.subr.bf16.mxu0 0
  %1763 = vmatpush1.bf16.msra.mxu0 0
  %1764 = vmatprep.subr.bf16.mxu0 0
  %1765 = vmatpush1.bf16.msra.mxu0 0
  %1766 = vmatprep.subr.bf16.mxu0 0
  %1767 = vmatpush1.bf16.msra.mxu0 0
  %1768 = vmatprep.mubr.bf16.mxu0 0
  %1769 = vmatmul.mubr.bf16.gmra.mrb[0].mxu0 %v1479
  %v1770 = vpop.f32.mrb[0].mxu0
  %v1771 = vadd.f32 0.0, %v1770
  %v1772 = vpop.f32.mrb[0].mxu0
  %v1773 = vpop.f32.mrb[0].mxu0
  %v1774 = vadd.f32 0.0, %v1773
  %v1775 = vpop.f32.mrb[0].mxu0
  %1776 = vmatprep.mubr.bf16.mxu0 0
  %1777 = vmatmul.mubr.bf16.gmra.mrb[0].mxu0 %v1482
  %v1778 = vpop.f32.mrb[0].mxu0
  %v1779 = vadd.f32 0.0, %v1778
  %v1780 = vpop.f32.mrb[0].mxu0
  %v1781 = vpop.f32.mrb[0].mxu0
  %v1782 = vadd.f32 0.0, %v1781
  %v1783 = vpop.f32.mrb[0].mxu0
  %1784 = vmatprep.mubr.bf16.mxu0 0
  %1785 = vmatmul.mubr.bf16.gmra.mrb[0].mxu0 %v1485
  %v1786 = vpop.f32.mrb[0].mxu0
  %v1787 = vadd.f32 0.0, %v1786
  %v1788 = vpop.f32.mrb[0].mxu0
  %v1789 = vpop.f32.mrb[0].mxu0
  %v1790 = vadd.f32 0.0, %v1789
  %v1791 = vpop.f32.mrb[0].mxu0
  %1792 = vmatprep.mubr.bf16.mxu0 0
  %1793 = vmatmul.mubr.bf16.gmra.mrb[0].mxu0 %v1488
  %v1794 = vpop.f32.mrb[0].mxu0
  %v1795 = vadd.f32 0.0, %v1794
  %v1796 = vpop.f32.mrb[0].mxu0
  %v1797 = vpop.f32.mrb[0].mxu0
  %v1798 = vadd.f32 0.0, %v1797
  %v1799 = vpop.f32.mrb[0].mxu0
  %1800 = vmatprep.mubr.bf16.mxu0 0
  %1801 = vmatmul.mubr.bf16.gmra.mrb[0].mxu0 %v1491
  %v1802 = vpop.f32.mrb[0].mxu0
  %v1803 = vadd.f32 0.0, %v1802
  %v1804 = vpop.f32.mrb[0].mxu0
  %v1805 = vpop.f32.mrb[0].mxu0
  %v1806 = vadd.f32 0.0, %v1805
  %v1807 = vpop.f32.mrb[0].mxu0
  %1808 = vmatprep.mubr.bf16.mxu0 0
  %1809 = vmatmul.mubr.bf16.gmra.mrb[0].mxu0 %v1494
  %v1810 = vpop.f32.mrb[0].mxu0
  %v1811 = vadd.f32 0.0, %v1810
  %v1812 = vpop.f32.mrb[0].mxu0
  %v1813 = vpop.f32.mrb[0].mxu0
  %v1814 = vadd.f32 0.0, %v1813
  %v1815 = vpop.f32.mrb[0].mxu0
  %1816 = vmatprep.mubr.bf16.mxu0 0
  %1817 = vmatmul.mubr.bf16.gmra.mrb[0].mxu0 %v1497
  %v1818 = vpop.f32.mrb[0].mxu0
  %v1819 = vadd.f32 0.0, %v1818
  %v1820 = vpop.f32.mrb[0].mxu0
  %v1821 = vpop.f32.mrb[0].mxu0
  %v1822 = vadd.f32 0.0, %v1821
  %v1823 = vpop.f32.mrb[0].mxu0
  %1824 = vmatprep.mubr.bf16.mxu0 0
  %1825 = vmatmul.mubr.bf16.gmra.mrb[0].mxu0 %v1500
  %v1826 = vpop.f32.mrb[0].mxu0
  %v1827 = vadd.f32 0.0, %v1826
  %v1828 = vpop.f32.mrb[0].mxu0
  %v1829 = vpop.f32.mrb[0].mxu0
  %v1830 = vadd.f32 0.0, %v1829
  %v1831 = vpop.f32.mrb[0].mxu0
  %1832 = vdwg.mxu0
  %v1849 = vrot.slane %v1555, 1
  %v1850 = vrot.slane %v1558, 1
  %v1851 = vsel %vm175, %v1849, %v1850
  %v1852 = vrot.slane %v1564, 1
  %v1853 = vrot.slane %v1567, 1
  %v1854 = vsel %vm175, %v1852, %v1853
  %v1855 = vrot.slane %v1573, 1
  %v1856 = vrot.slane %v1576, 1
  %v1857 = vsel %vm175, %v1855, %v1856
  %v1858 = vrot.slane %v1582, 1
  %v1859 = vrot.slane %v1585, 1
  %v1860 = vsel %vm175, %v1858, %v1859
  %v1861 = vrot.slane %v1591, 1
  %v1862 = vrot.slane %v1594, 1
  %v1863 = vsel %vm175, %v1861, %v1862
  %v1864 = vrot.slane %v1600, 1
  %v1865 = vrot.slane %v1603, 1
  %v1866 = vsel %vm175, %v1864, %v1865
  %v1867 = vrot.slane %v1609, 1
  %v1868 = vrot.slane %v1612, 1
  %v1869 = vsel %vm175, %v1867, %v1868
  %v1870 = vrot.slane %v1618, 1
  %v1871 = vrot.slane %v1621, 1
  %v1872 = vsel %vm175, %v1870, %v1871
  %v1881 = vadd.f32 %v1553, %v1851
  %v1882 = vadd.f32 %v1562, %v1854
  %v1883 = vadd.f32 %v1571, %v1857
  %v1884 = vadd.f32 %v1580, %v1860
  %v1885 = vadd.f32 %v1589, %v1863
  %v1886 = vadd.f32 %v1598, %v1866
  %v1887 = vadd.f32 %v1607, %v1869
  %v1888 = vadd.f32 %v1616, %v1872
  %v1905 = vrot.slane %v1658, 2
  %v1906 = vrot.slane %v1662, 2
  %v1907 = vsel %vm360, %v1905, %v1906
  %v1908 = vrot.slane %v1668, 2
  %v1909 = vrot.slane %v1672, 2
  %v1910 = vsel %vm360, %v1908, %v1909
  %v1911 = vrot.slane %v1678, 2
  %v1912 = vrot.slane %v1682, 2
  %v1913 = vsel %vm360, %v1911, %v1912
  %v1914 = vrot.slane %v1688, 2
  %v1915 = vrot.slane %v1692, 2
  %v1916 = vsel %vm360, %v1914, %v1915
  %v1917 = vrot.slane %v1698, 2
  %v1918 = vrot.slane %v1702, 2
  %v1919 = vsel %vm360, %v1917, %v1918
  %v1920 = vrot.slane %v1708, 2
  %v1921 = vrot.slane %v1712, 2
  %v1922 = vsel %vm360, %v1920, %v1921
  %v1923 = vrot.slane %v1718, 2
  %v1924 = vrot.slane %v1722, 2
  %v1925 = vsel %vm360, %v1923, %v1924
  %v1926 = vrot.slane %v1728, 2
  %v1927 = vrot.slane %v1732, 2
  %v1928 = vsel %vm360, %v1926, %v1927
  %v1937 = vadd.f32 %v1881, %v1907
  %v1938 = vadd.f32 %v1882, %v1910
  %v1939 = vadd.f32 %v1883, %v1913
  %v1940 = vadd.f32 %v1884, %v1916
  %v1941 = vadd.f32 %v1885, %v1919
  %v1942 = vadd.f32 %v1886, %v1922
  %v1943 = vadd.f32 %v1887, %v1925
  %v1944 = vadd.f32 %v1888, %v1928
  %vm1961 = vcmask 1044480
  %v1962 = vrot.slane %v1660, 3
  %v1963 = vrot.slane %v1664, 3
  %v1964 = vsel %vm1961, %v1962, %v1963
  %v1965 = vrot.slane %v1670, 3
  %v1966 = vrot.slane %v1674, 3
  %v1967 = vsel %vm1961, %v1965, %v1966
  %v1968 = vrot.slane %v1680, 3
  %v1969 = vrot.slane %v1684, 3
  %v1970 = vsel %vm1961, %v1968, %v1969
  %v1971 = vrot.slane %v1690, 3
  %v1972 = vrot.slane %v1694, 3
  %v1973 = vsel %vm1961, %v1971, %v1972
  %v1974 = vrot.slane %v1700, 3
  %v1975 = vrot.slane %v1704, 3
  %v1976 = vsel %vm1961, %v1974, %v1975
  %v1977 = vrot.slane %v1710, 3
  %v1978 = vrot.slane %v1714, 3
  %v1979 = vsel %vm1961, %v1977, %v1978
  %v1980 = vrot.slane %v1720, 3
  %v1981 = vrot.slane %v1724, 3
  %v1982 = vsel %vm1961, %v1980, %v1981
  %v1983 = vrot.slane %v1730, 3
  %v1984 = vrot.slane %v1734, 3
  %v1985 = vsel %vm1961, %v1983, %v1984
  %v1994 = vadd.f32 %v1937, %v1964
  %v1995 = vadd.f32 %v1938, %v1967
  %v1996 = vadd.f32 %v1939, %v1970
  %v1997 = vadd.f32 %v1940, %v1973
  %v1998 = vadd.f32 %v1941, %v1976
  %v1999 = vadd.f32 %v1942, %v1979
  %v2000 = vadd.f32 %v1943, %v1982
  %v2001 = vadd.f32 %v1944, %v1985
  %v2018 = vrot.slane %v1771, 4
  %v2019 = vrot.slane %v1774, 4
  %v2020 = vsel %vm1502, %v2018, %v2019
  %v2021 = vrot.slane %v1779, 4
  %v2022 = vrot.slane %v1782, 4
  %v2023 = vsel %vm1502, %v2021, %v2022
  %v2024 = vrot.slane %v1787, 4
  %v2025 = vrot.slane %v1790, 4
  %v2026 = vsel %vm1502, %v2024, %v2025
  %v2027 = vrot.slane %v1795, 4
  %v2028 = vrot.slane %v1798, 4
  %v2029 = vsel %vm1502, %v2027, %v2028
  %v2030 = vrot.slane %v1803, 4
  %v2031 = vrot.slane %v1806, 4
  %v2032 = vsel %vm1502, %v2030, %v2031
  %v2033 = vrot.slane %v1811, 4
  %v2034 = vrot.slane %v1814, 4
  %v2035 = vsel %vm1502, %v2033, %v2034
  %v2036 = vrot.slane %v1819, 4
  %v2037 = vrot.slane %v1822, 4
  %v2038 = vsel %vm1502, %v2036, %v2037
  %v2039 = vrot.slane %v1827, 4
  %v2040 = vrot.slane %v1830, 4
  %v2041 = vsel %vm1502, %v2039, %v2040
  %v2050 = vadd.f32 %v1994, %v2020
  %v2051 = vadd.f32 %v1995, %v2023
  %v2052 = vadd.f32 %v1996, %v2026
  %v2053 = vadd.f32 %v1997, %v2029
  %v2054 = vadd.f32 %v1998, %v2032
  %v2055 = vadd.f32 %v1999, %v2035
  %v2056 = vadd.f32 %v2000, %v2038
  %v2057 = vadd.f32 %v2001, %v2041
  %v2058 = vld [vmem:[%s4] sm:$0x1]
  %v2060 = vlaneseq
  %v2061 = vshrl.u32 %v2060, 7
  %v2062 = vsub.s32 0, %v2061
  %v2063 = vrot.slane %v2058, %v2062
  %v2065 = vadd.f32 %v2050, %v2063
  %v2066 = vadd.f32 %v2051, %v2063
  %v2067 = vadd.f32 %v2052, %v2063
  %v2068 = vadd.f32 %v2053, %v2063
  %v2069 = vadd.f32 %v2054, %v2063
  %v2070 = vadd.f32 %v2055, %v2063
  %v2071 = vadd.f32 %v2056, %v2063
  %v2072 = vadd.f32 %v2057, %v2063
  %v2073 = vmax.f32 %v2065, 0.0
  %v2074 = vmax.f32 %v2066, 0.0
  %v2075 = vmax.f32 %v2067, 0.0
  %v2076 = vmax.f32 %v2068, 0.0
  %v2077 = vmax.f32 %v2069, 0.0
  %v2078 = vmax.f32 %v2070, 0.0
  %v2079 = vmax.f32 %v2071, 0.0
  %v2080 = vmax.f32 %v2072, 0.0
  %v2089 = vrot.slane %v2073, 1
  %v2090 = vrot.slane %v2074, 1
  %v2091 = vrot.slane %v2075, 1
  %v2092 = vrot.slane %v2076, 1
  %v2093 = vrot.slane %v2077, 1
  %v2094 = vrot.slane %v2078, 1
  %v2095 = vrot.slane %v2079, 1
  %v2096 = vrot.slane %v2080, 1
  %v2105 = vmax.f32 %v2073, %v2089
  %v2106 = vmax.f32 %v2074, %v2090
  %v2107 = vmax.f32 %v2075, %v2091
  %v2108 = vmax.f32 %v2076, %v2092
  %v2109 = vmax.f32 %v2077, %v2093
  %v2110 = vmax.f32 %v2078, %v2094
  %v2111 = vmax.f32 %v2079, %v2095
  %v2112 = vmax.f32 %v2080, %v2096
  %2121 = vrot.lane.b32.xlu0 %v2105, 112
  %v2122 = vpop.permute.xlu0 %2121
  %2123 = vrot.lane.b32.xlu0 %v2106, 112
  %v2124 = vpop.permute.xlu0 %2123
  %2125 = vrot.lane.b32.xlu0 %v2107, 112
  %v2126 = vpop.permute.xlu0 %2125
  %2127 = vrot.lane.b32.xlu0 %v2108, 112
  %v2128 = vpop.permute.xlu0 %2127
  %2129 = vrot.lane.b32.xlu0 %v2109, 112
  %v2130 = vpop.permute.xlu0 %2129
  %2131 = vrot.lane.b32.xlu0 %v2110, 112
  %v2132 = vpop.permute.xlu0 %2131
  %2133 = vrot.lane.b32.xlu0 %v2111, 112
  %v2134 = vpop.permute.xlu0 %2133
  %2135 = vrot.lane.b32.xlu0 %v2112, 112
  %v2136 = vpop.permute.xlu0 %2135
  %v2145 = vmax.f32 %v2105, %v2122
  %v2146 = vmax.f32 %v2106, %v2124
  %v2147 = vmax.f32 %v2107, %v2126
  %v2148 = vmax.f32 %v2108, %v2128
  %v2149 = vmax.f32 %v2109, %v2130
  %v2150 = vmax.f32 %v2110, %v2132
  %v2151 = vmax.f32 %v2111, %v2134
  %v2152 = vmax.f32 %v2112, %v2136
  %v2161 = vrot.slane %v2146, 7
  %vm2162 = vcmask 1041409
  %v2163 = vsel %vm2162, %v2161, %v2145
  %v2164 = vrot.slane %v2147, 6
  %vm2165 = vcmask 1042434
  %v2166 = vsel %vm2165, %v2164, %v2163
  %v2167 = vrot.slane %v2148, 5
  %vm2168 = vcmask 1043459
  %v2169 = vsel %vm2168, %v2167, %v2166
  %v2170 = vrot.slane %v2149, 4
  %vm2171 = vcmask 1044484
  %v2172 = vsel %vm2171, %v2170, %v2169
  %v2173 = vrot.slane %v2150, 3
  %vm2174 = vcmask 1045509
  %v2175 = vsel %vm2174, %v2173, %v2172
  %v2176 = vrot.slane %v2151, 2
  %vm2177 = vcmask 1046534
  %v2178 = vsel %vm2177, %v2176, %v2175
  %v2179 = vrot.slane %v2152, 1
  %vm2180 = vcmask 1047559
  %v2181 = vsel %vm2180, %v2179, %v2178
  %v2183 = vrot.slane %v2145, 2
  %v2184 = vrot.slane %v2146, 1
  %v2185 = vsel %vm2162, %v2184, %v2183
  %v2186 = vsel %vm2165, %v2147, %v2185
  %v2187 = vrot.slane %v2148, 7
  %v2188 = vsel %vm2168, %v2187, %v2186
  %v2189 = vrot.slane %v2149, 6
  %v2190 = vsel %vm2171, %v2189, %v2188
  %v2191 = vrot.slane %v2150, 5
  %v2192 = vsel %vm2174, %v2191, %v2190
  %v2193 = vrot.slane %v2151, 4
  %v2194 = vsel %vm2177, %v2193, %v2192
  %v2195 = vrot.slane %v2152, 3
  %v2196 = vsel %vm2180, %v2195, %v2194
  %2197 = vrot.lane.b32.xlu0 %v2196, 112
  %v2198 = vpop.permute.xlu0 %2197
  %v2200 = vrot.slane %v2145, 4
  %v2201 = vrot.slane %v2146, 3
  %v2202 = vsel %vm2162, %v2201, %v2200
  %v2203 = vrot.slane %v2147, 2
  %v2204 = vsel %vm2165, %v2203, %v2202
  %v2205 = vrot.slane %v2148, 1
  %v2206 = vsel %vm2168, %v2205, %v2204
  %v2207 = vsel %vm2171, %v2149, %v2206
  %v2208 = vrot.slane %v2150, 7
  %v2209 = vsel %vm2174, %v2208, %v2207
  %v2210 = vrot.slane %v2151, 6
  %v2211 = vsel %vm2177, %v2210, %v2209
  %v2212 = vrot.slane %v2152, 5
  %v2213 = vsel %vm2180, %v2212, %v2211
  %2214 = vrot.lane.b32.xlu0 %v2213, 96
  %v2215 = vpop.permute.xlu0 %2214
  %v2217 = vrot.slane %v2145, 6
  %v2218 = vrot.slane %v2146, 5
  %v2219 = vsel %vm2162, %v2218, %v2217
  %v2220 = vrot.slane %v2147, 4
  %v2221 = vsel %vm2165, %v2220, %v2219
  %v2222 = vrot.slane %v2148, 3
  %v2223 = vsel %vm2168, %v2222, %v2221
  %v2224 = vrot.slane %v2149, 2
  %v2225 = vsel %vm2171, %v2224, %v2223
  %v2226 = vrot.slane %v2150, 1
  %v2227 = vsel %vm2174, %v2226, %v2225
  %v2228 = vsel %vm2177, %v2151, %v2227
  %v2229 = vrot.slane %v2152, 7
  %v2230 = vsel %vm2180, %v2229, %v2228
  %2231 = vrot.lane.b32.xlu0 %v2230, 80
  %v2232 = vpop.permute.xlu0 %2231
  %vm2234 = vcmask 916480
  %v2235 = vsel %vm2234, %v2181, %v2198
  %v2236 = vsel %vm451, %v2198, %v2215
  %vm2237 = vcmask 654336
  %v2238 = vsel %vm2237, %v2215, %v2232
  %v2239 = vpack.c.bf16 %v2235, %v2235
  %v2240 = vpack.c.bf16 %v2236, %v2236
  %v2241 = vpack.c.bf16 %v2238, %v2238
  %v2242 = vpack.c.bf16 %v2232, %v2232
  %v2243 = vld [vmem:[%s5] sm:$0xf]
  %v2244 = vld [vmem:[%s5 + $0x4] sm:$0xf]
  %v2245 = vld [vmem:[%s5 + $0x8] sm:$0xf]
  %v2246 = vld [vmem:[%s5 + $0xc] sm:$0xf]
  %v2247 = vld [vmem:[%s5 + $0x10] sm:$0xf]
  %v2248 = vld [vmem:[%s5 + $0x14] sm:$0xf]
  %v2249 = vld [vmem:[%s5 + $0x18] sm:$0xf]
  %v2250 = vld [vmem:[%s5 + $0x1c] sm:$0xf]
  %v2251 = vld [vmem:[%s5 + $0x20] sm:$0xf]
  %v2252 = vld [vmem:[%s5 + $0x24] sm:$0xf]
  %v2253 = vld [vmem:[%s5 + $0x28] sm:$0xf]
  %v2254 = vld [vmem:[%s5 + $0x2c] sm:$0xf]
  %v2255 = vld [vmem:[%s5 + $0x30] sm:$0xf]
  %v2256 = vld [vmem:[%s5 + $0x34] sm:$0xf]
  %v2257 = vld [vmem:[%s5 + $0x38] sm:$0xf]
  %v2258 = vld [vmem:[%s5 + $0x3c] sm:$0xf]
  %v2259 = vld [vmem:[%s5 + $0x40] sm:$0xf]
  %v2260 = vld [vmem:[%s5 + $0x44] sm:$0xf]
  %v2261 = vld [vmem:[%s5 + $0x48] sm:$0xf]
  %v2262 = vld [vmem:[%s5 + $0x4c] sm:$0xf]
  %v2263 = vld [vmem:[%s5 + $0x50] sm:$0xf]
  %v2264 = vld [vmem:[%s5 + $0x54] sm:$0xf]
  %v2265 = vld [vmem:[%s5 + $0x58] sm:$0xf]
  %v2266 = vld [vmem:[%s5 + $0x5c] sm:$0xf]
  %v2267 = vld [vmem:[%s5 + $0x60] sm:$0xf]
  %v2268 = vld [vmem:[%s5 + $0x64] sm:$0xf]
  %v2269 = vld [vmem:[%s5 + $0x68] sm:$0xf]
  %v2270 = vld [vmem:[%s5 + $0x6c] sm:$0xf]
  %v2271 = vld [vmem:[%s5 + $0x70] sm:$0xf]
  %v2272 = vld [vmem:[%s5 + $0x74] sm:$0xf]
  %v2273 = vld [vmem:[%s5 + $0x78] sm:$0xf]
  %v2274 = vld [vmem:[%s5 + $0x7c] sm:$0xf]
  %v2275 = vld [vmem:[%s5 + $0x80] sm:$0xf]
  %v2276 = vld [vmem:[%s5 + $0x84] sm:$0xf]
  %v2277 = vld [vmem:[%s5 + $0x88] sm:$0xf]
  %v2278 = vld [vmem:[%s5 + $0x8c] sm:$0xf]
  %v2279 = vld [vmem:[%s5 + $0x90] sm:$0xf]
  %v2280 = vld [vmem:[%s5 + $0x94] sm:$0xf]
  %v2281 = vld [vmem:[%s5 + $0x98] sm:$0xf]
  %v2282 = vld [vmem:[%s5 + $0x9c] sm:$0xf]
  %v2283 = vld [vmem:[%s5 + $0xa0] sm:$0xf]
  %v2284 = vld [vmem:[%s5 + $0xa4] sm:$0xf]
  %v2285 = vld [vmem:[%s5 + $0xa8] sm:$0xf]
  %v2286 = vld [vmem:[%s5 + $0xac] sm:$0xf]
  %v2287 = vld [vmem:[%s5 + $0xb0] sm:$0xf]
  %v2288 = vld [vmem:[%s5 + $0xb4] sm:$0xf]
  %v2289 = vld [vmem:[%s5 + $0xb8] sm:$0xf]
  %v2290 = vld [vmem:[%s5 + $0xbc] sm:$0xf]
  %v2291 = vld [vmem:[%s5 + $0xc0] sm:$0xf]
  %v2292 = vld [vmem:[%s5 + $0xc4] sm:$0xf]
  %v2293 = vld [vmem:[%s5 + $0xc8] sm:$0xf]
  %v2294 = vld [vmem:[%s5 + $0xcc] sm:$0xf]
  %v2295 = vld [vmem:[%s5 + $0xd0] sm:$0xf]
  %v2296 = vld [vmem:[%s5 + $0xd4] sm:$0xf]
  %v2297 = vld [vmem:[%s5 + $0xd8] sm:$0xf]
  %v2298 = vld [vmem:[%s5 + $0xdc] sm:$0xf]
  %v2299 = vld [vmem:[%s6] sm:$0x1]
  %v2301 = vlaneseq
  %v2302 = vshrl.u32 %v2301, 7
  %v2303 = vsub.s32 0, %v2302
  %v2304 = vrot.slane %v2299, %v2303
  %v2362 = vunpack.c.l.b16 %v2243
  %v2363 = vunpack.c.l.b16 %v2244
  %v2364 = vunpack.c.l.b16 %v2245
  %v2365 = vunpack.c.l.b16 %v2246
  %v2366 = vunpack.c.l.b16 %v2247
  %v2367 = vunpack.c.l.b16 %v2248
  %v2368 = vunpack.c.l.b16 %v2249
  %v2369 = vunpack.c.l.b16 %v2250
  %v2370 = vunpack.c.l.b16 %v2251
  %v2371 = vunpack.c.l.b16 %v2252
  %v2372 = vunpack.c.l.b16 %v2253
  %v2373 = vunpack.c.l.b16 %v2254
  %v2374 = vunpack.c.l.b16 %v2255
  %v2375 = vunpack.c.l.b16 %v2256
  %v2376 = vunpack.c.l.b16 %v2257
  %v2377 = vunpack.c.l.b16 %v2258
  %v2378 = vunpack.c.l.b16 %v2259
  %v2379 = vunpack.c.l.b16 %v2260
  %v2380 = vunpack.c.l.b16 %v2261
  %v2381 = vunpack.c.l.b16 %v2262
  %v2382 = vunpack.c.l.b16 %v2263
  %v2383 = vunpack.c.l.b16 %v2264
  %v2384 = vunpack.c.l.b16 %v2265
  %v2385 = vunpack.c.l.b16 %v2266
  %v2386 = vunpack.c.l.b16 %v2267
  %v2387 = vunpack.c.l.b16 %v2268
  %v2388 = vunpack.c.l.b16 %v2269
  %v2389 = vunpack.c.l.b16 %v2270
  %v2390 = vunpack.c.l.b16 %v2271
  %v2391 = vunpack.c.l.b16 %v2272
  %v2392 = vunpack.c.l.b16 %v2273
  %v2393 = vunpack.c.l.b16 %v2274
  %v2394 = vunpack.c.l.b16 %v2275
  %v2395 = vunpack.c.l.b16 %v2276
  %v2396 = vunpack.c.l.b16 %v2277
  %v2397 = vunpack.c.l.b16 %v2278
  %v2398 = vunpack.c.l.b16 %v2279
  %v2399 = vunpack.c.l.b16 %v2280
  %v2400 = vunpack.c.l.b16 %v2281
  %v2401 = vunpack.c.l.b16 %v2282
  %v2402 = vunpack.c.l.b16 %v2283
  %v2403 = vunpack.c.l.b16 %v2284
  %v2404 = vunpack.c.l.b16 %v2285
  %v2405 = vunpack.c.l.b16 %v2286
  %v2406 = vunpack.c.l.b16 %v2287
  %v2407 = vunpack.c.l.b16 %v2288
  %v2408 = vunpack.c.l.b16 %v2289
  %v2409 = vunpack.c.l.b16 %v2290
  %v2410 = vunpack.c.l.b16 %v2291
  %v2411 = vunpack.c.l.b16 %v2292
  %v2412 = vunpack.c.l.b16 %v2293
  %v2413 = vunpack.c.l.b16 %v2294
  %v2414 = vunpack.c.l.b16 %v2295
  %v2415 = vunpack.c.l.b16 %v2296
  %v2416 = vunpack.c.l.b16 %v2297
  %v2417 = vunpack.c.l.b16 %v2298
  %v2418 = vpack.c.b16 %v2363, %v2362
  %v2419 = vpack.c.b16 %v2365, %v2364
  %v2420 = vpack.c.b16 %v2367, %v2366
  %v2421 = vpack.c.b16 %v2369, %v2368
  %v2422 = vpack.c.b16 %v2371, %v2370
  %v2423 = vpack.c.b16 %v2373, %v2372
  %v2424 = vpack.c.b16 %v2375, %v2374
  %v2425 = vpack.c.b16 %v2377, %v2376
  %v2426 = vpack.c.b16 %v2379, %v2378
  %v2427 = vpack.c.b16 %v2381, %v2380
  %v2428 = vpack.c.b16 %v2383, %v2382
  %v2429 = vpack.c.b16 %v2385, %v2384
  %v2430 = vpack.c.b16 %v2387, %v2386
  %v2431 = vpack.c.b16 %v2389, %v2388
  %v2432 = vpack.c.b16 %v2391, %v2390
  %v2433 = vpack.c.b16 %v2393, %v2392
  %v2434 = vpack.c.b16 %v2395, %v2394
  %v2435 = vpack.c.b16 %v2397, %v2396
  %v2436 = vpack.c.b16 %v2399, %v2398
  %v2437 = vpack.c.b16 %v2401, %v2400
  %v2438 = vpack.c.b16 %v2403, %v2402
  %v2439 = vpack.c.b16 %v2405, %v2404
  %v2440 = vpack.c.b16 %v2407, %v2406
  %v2441 = vpack.c.b16 %v2409, %v2408
  %v2442 = vpack.c.b16 %v2411, %v2410
  %v2443 = vpack.c.b16 %v2413, %v2412
  %v2444 = vpack.c.b16 %v2415, %v2414
  %v2445 = vpack.c.b16 %v2417, %v2416
  %v2475 = vsel %vm434, %v2242, 0
  %2477 = vmatprep.subr.bf16.mxu0 0
  %2478 = vmatpush1.bf16.msra.mxu0 %v2418
  %2479 = vmatprep.subr.bf16.mxu0 0
  %2480 = vmatpush1.bf16.msra.mxu0 %v2419
  %2481 = vmatprep.subr.bf16.mxu0 0
  %2482 = vmatpush1.bf16.msra.mxu0 %v2420
  %2483 = vmatprep.subr.bf16.mxu0 0
  %2484 = vmatpush1.bf16.msra.mxu0 %v2421
  %2485 = vmatprep.subr.bf16.mxu0 0
  %2486 = vmatpush1.bf16.msra.mxu0 %v2422
  %2487 = vmatprep.subr.bf16.mxu0 0
  %2488 = vmatpush1.bf16.msra.mxu0 %v2423
  %2489 = vmatprep.subr.bf16.mxu0 0
  %2490 = vmatpush1.bf16.msra.mxu0 %v2424
  %2491 = vmatprep.subr.bf16.mxu0 0
  %2492 = vmatpush1.bf16.msra.mxu0 %v2425
  %2493 = vmatprep.subr.bf16.mxu0 0
  %2494 = vmatpush1.bf16.msra.mxu0 %v2426
  %2495 = vmatprep.subr.bf16.mxu0 0
  %2496 = vmatpush1.bf16.msra.mxu0 %v2427
  %2497 = vmatprep.subr.bf16.mxu0 0
  %2498 = vmatpush1.bf16.msra.mxu0 %v2428
  %2499 = vmatprep.subr.bf16.mxu0 0
  %2500 = vmatpush1.bf16.msra.mxu0 %v2429
  %2501 = vmatprep.subr.bf16.mxu0 0
  %2502 = vmatpush1.bf16.msra.mxu0 %v2430
  %2503 = vmatprep.subr.bf16.mxu0 0
  %2504 = vmatpush1.bf16.msra.mxu0 %v2431
  %2505 = vmatprep.subr.bf16.mxu0 0
  %2506 = vmatpush1.bf16.msra.mxu0 %v2432
  %2507 = vmatprep.subr.bf16.mxu0 0
  %2508 = vmatpush1.bf16.msra.mxu0 %v2433
  %2509 = vmatprep.mubr.bf16.mxu0 %v2240
  %2510 = vmatmul.mubr.bf16.gmra.mrb[0].mxu0 %v2239
  %v2511 = vpop.f32.mrb[0].mxu0
  %v2512 = vadd.f32 %v2304, %v2511
  %v2513 = vpop.f32.mrb[0].mxu0
  %v2514 = vpop.f32.mrb[0].mxu0
  %v2515 = vpop.f32.mrb[0].mxu0
  %2516 = vdwg.mxu0
  %2517 = vmatprep.subr.bf16.mxu0 0
  %2518 = vmatpush1.bf16.msra.mxu0 %v2434
  %2519 = vmatprep.subr.bf16.mxu0 0
  %2520 = vmatpush1.bf16.msra.mxu0 %v2435
  %2521 = vmatprep.subr.bf16.mxu0 0
  %2522 = vmatpush1.bf16.msra.mxu0 %v2436
  %2523 = vmatprep.subr.bf16.mxu0 0
  %2524 = vmatpush1.bf16.msra.mxu0 %v2437
  %2525 = vmatprep.subr.bf16.mxu0 0
  %2526 = vmatpush1.bf16.msra.mxu0 %v2438
  %2527 = vmatprep.subr.bf16.mxu0 0
  %2528 = vmatpush1.bf16.msra.mxu0 %v2439
  %2529 = vmatprep.subr.bf16.mxu0 0
  %2530 = vmatpush1.bf16.msra.mxu0 %v2440
  %2531 = vmatprep.subr.bf16.mxu0 0
  %2532 = vmatpush1.bf16.msra.mxu0 %v2441
  %2533 = vmatprep.subr.bf16.mxu0 0
  %2534 = vmatpush1.bf16.msra.mxu0 %v2442
  %2535 = vmatprep.subr.bf16.mxu0 0
  %2536 = vmatpush1.bf16.msra.mxu0 %v2443
  %2537 = vmatprep.subr.bf16.mxu0 0
  %2538 = vmatpush1.bf16.msra.mxu0 %v2444
  %2539 = vmatprep.subr.bf16.mxu0 0
  %2540 = vmatpush1.bf16.msra.mxu0 %v2445
  %2541 = vmatprep.subr.bf16.mxu0 0
  %2542 = vmatpush1.bf16.msra.mxu0 0
  %2543 = vmatprep.subr.bf16.mxu0 0
  %2544 = vmatpush1.bf16.msra.mxu0 0
  %2545 = vmatprep.subr.bf16.mxu0 0
  %2546 = vmatpush1.bf16.msra.mxu0 0
  %2547 = vmatprep.subr.bf16.mxu0 0
  %2548 = vmatpush1.bf16.msra.mxu0 0
  %2549 = vmatprep.mubr.bf16.mxu0 %v2475
  %2550 = vmatmul.mubr.bf16.gmra.mrb[0].mxu0 %v2241
  %v2551 = vpop.f32.mrb[0].mxu0
  %v2552 = vadd.f32 %v2512, %v2551
  %v2553 = vpop.f32.mrb[0].mxu0
  %v2554 = vpop.f32.mrb[0].mxu0
  %v2555 = vpop.f32.mrb[0].mxu0
  %2556 = vdwg.mxu0
  %v2557 = vmax.f32 %v2552, 0.0
  %v2558 = vpack.c.bf16 %v2557, %v2557
  %v2559 = vld [vmem:[%s7] sm:$0xf]
  %v2560 = vld [vmem:[%s7 + $0x4] sm:$0xf]
  %v2561 = vld [vmem:[%s7 + $0x8] sm:$0xf]
  %v2562 = vld [vmem:[%s7 + $0xc] sm:$0xf]
  %v2563 = vld [vmem:[%s7 + $0x10] sm:$0xf]
  %v2564 = vld [vmem:[%s7 + $0x14] sm:$0xf]
  %v2565 = vld [vmem:[%s7 + $0x18] sm:$0xf]
  %v2566 = vld [vmem:[%s7 + $0x1c] sm:$0xf]
  %v2567 = vld [vmem:[%s7 + $0x20] sm:$0xf]
  %v2568 = vld [vmem:[%s7 + $0x24] sm:$0xf]
  %v2569 = vld [vmem:[%s7 + $0x28] sm:$0xf]
  %v2570 = vld [vmem:[%s7 + $0x2c] sm:$0xf]
  %v2571 = vld [vmem:[%s7 + $0x30] sm:$0xf]
  %v2572 = vld [vmem:[%s7 + $0x34] sm:$0xf]
  %v2573 = vld [vmem:[%s7 + $0x38] sm:$0xf]
  %v2574 = vld [vmem:[%s8] sm:$0x1]
  %v2576 = vlaneseq
  %v2577 = vshrl.u32 %v2576, 7
  %v2578 = vsub.s32 0, %v2577
  %v2579 = vrot.slane %v2574, %v2578
  %v2596 = vunpack.c.l.b16 %v2559
  %v2597 = vunpack.c.l.b16 %v2560
  %v2598 = vunpack.c.l.b16 %v2561
  %v2599 = vunpack.c.l.b16 %v2562
  %v2600 = vunpack.c.l.b16 %v2563
  %v2601 = vunpack.c.l.b16 %v2564
  %v2602 = vunpack.c.l.b16 %v2565
  %v2603 = vunpack.c.l.b16 %v2566
  %v2604 = vunpack.c.l.b16 %v2567
  %v2605 = vunpack.c.l.b16 %v2568
  %v2606 = vunpack.c.l.b16 %v2569
  %v2607 = vunpack.c.l.b16 %v2570
  %v2608 = vunpack.c.l.b16 %v2571
  %v2609 = vunpack.c.l.b16 %v2572
  %v2610 = vunpack.c.l.b16 %v2573
  %v2611 = vpack.c.b16 %v2597, %v2596
  %v2612 = vpack.c.b16 %v2599, %v2598
  %v2613 = vpack.c.b16 %v2601, %v2600
  %v2614 = vpack.c.b16 %v2603, %v2602
  %v2615 = vpack.c.b16 %v2605, %v2604
  %v2616 = vpack.c.b16 %v2607, %v2606
  %v2617 = vpack.c.b16 %v2609, %v2608
  %v2618 = vpack.c.b16 %v2610, %v2610
  %vm2626 = vcmask 982016
  %v2628 = vsel %vm2626, %v2558, 0
  %v2631 = vsel %vm1502, %v2618, 0
  %2633 = vmatprep.subr.bf16.mxu0 0
  %2634 = vmatpush1.bf16.msra.mxu0 %v2611
  %2635 = vmatprep.subr.bf16.mxu0 0
  %2636 = vmatpush1.bf16.msra.mxu0 %v2612
  %2637 = vmatprep.subr.bf16.mxu0 0
  %2638 = vmatpush1.bf16.msra.mxu0 %v2613
  %2639 = vmatprep.subr.bf16.mxu0 0
  %2640 = vmatpush1.bf16.msra.mxu0 %v2614
  %2641 = vmatprep.subr.bf16.mxu0 0
  %2642 = vmatpush1.bf16.msra.mxu0 %v2615
  %2643 = vmatprep.subr.bf16.mxu0 0
  %2644 = vmatpush1.bf16.msra.mxu0 %v2616
  %2645 = vmatprep.subr.bf16.mxu0 0
  %2646 = vmatpush1.bf16.msra.mxu0 %v2617
  %2647 = vmatprep.subr.bf16.mxu0 0
  %2648 = vmatpush1.bf16.msra.mxu0 %v2631
  %2649 = vmatprep.subr.bf16.mxu0 0
  %2650 = vmatpush1.bf16.msra.mxu0 0
  %2651 = vmatprep.subr.bf16.mxu0 0
  %2652 = vmatpush1.bf16.msra.mxu0 0
  %2653 = vmatprep.subr.bf16.mxu0 0
  %2654 = vmatpush1.bf16.msra.mxu0 0
  %2655 = vmatprep.subr.bf16.mxu0 0
  %2656 = vmatpush1.bf16.msra.mxu0 0
  %2657 = vmatprep.subr.bf16.mxu0 0
  %2658 = vmatpush1.bf16.msra.mxu0 0
  %2659 = vmatprep.subr.bf16.mxu0 0
  %2660 = vmatpush1.bf16.msra.mxu0 0
  %2661 = vmatprep.subr.bf16.mxu0 0
  %2662 = vmatpush1.bf16.msra.mxu0 0
  %2663 = vmatprep.subr.bf16.mxu0 0
  %2664 = vmatpush1.bf16.msra.mxu0 0
  %2665 = vmatprep.mubr.bf16.mxu0 0
  %2666 = vmatmul.mubr.bf16.gmra.mrb[0].mxu0 %v2628
  %v2667 = vpop.f32.mrb[0].mxu0
  %v2668 = vadd.f32 %v2579, %v2667
  %v2669 = vpop.f32.mrb[0].mxu0
  %v2670 = vpop.f32.mrb[0].mxu0
  %v2671 = vpop.f32.mrb[0].mxu0
  %2672 = vdwg.mxu0
  %v2673 = vmax.f32 %v2668, 0.0
  %v2674 = vpack.c.bf16 %v2673, %v2673
  %v2675 = vld [vmem:[%s9] sm:$0xf]
  %v2676 = vld [vmem:[%s9 + $0x4] sm:$0xf]
  %v2677 = vld [vmem:[%s9 + $0x8] sm:$0xf]
  %v2678 = vld [vmem:[%s9 + $0xc] sm:$0xf]
  %v2679 = vld [vmem:[%s9 + $0x10] sm:$0xf]
  %v2680 = vld [vmem:[%s9 + $0x14] sm:$0xf]
  %v2681 = vld [vmem:[%s9 + $0x18] sm:$0xf]
  %v2682 = vld [vmem:[%s9 + $0x1c] sm:$0xf]
  %v2683 = vld [vmem:[%s9 + $0x20] sm:$0xf]
  %v2684 = vld [vmem:[%s9 + $0x24] sm:$0xf]
  %v2685 = vld [vmem:[%s9 + $0x28] sm:$0x3]
  %v2686 = vld [vmem:[%s10] sm:$0x1]
  %v2688 = vlaneseq
  %v2689 = vshrl.u32 %v2688, 7
  %v2690 = vsub.s32 0, %v2689
  %v2691 = vrot.slane %v2686, %v2690
  %v2704 = vunpack.c.l.b16 %v2675
  %v2705 = vunpack.c.l.b16 %v2676
  %v2706 = vunpack.c.l.b16 %v2677
  %v2707 = vunpack.c.l.b16 %v2678
  %v2708 = vunpack.c.l.b16 %v2679
  %v2709 = vunpack.c.l.b16 %v2680
  %v2710 = vunpack.c.l.b16 %v2681
  %v2711 = vunpack.c.l.b16 %v2682
  %v2712 = vunpack.c.l.b16 %v2683
  %v2713 = vunpack.c.l.b16 %v2684
  %v2714 = vunpack.c.l.b16 %v2685
  %v2715 = vpack.c.b16 %v2705, %v2704
  %v2716 = vpack.c.b16 %v2707, %v2706
  %v2717 = vpack.c.b16 %v2709, %v2708
  %v2718 = vpack.c.b16 %v2711, %v2710
  %v2719 = vpack.c.b16 %v2713, %v2712
  %v2720 = vpack.c.b16 %v2714, %v2714
  %vm2726 = vcmask 687104
  %v2728 = vsel %vm2726, %v2674, 0
  %vm2730 = vcmask 1041408
  %v2732 = vsel %vm2730, %v2720, 0
  %2734 = vmatprep.subr.bf16.mxu0 0
  %2735 = vmatpush1.bf16.msra.mxu0 %v2715
  %2736 = vmatprep.subr.bf16.mxu0 0
  %2737 = vmatpush1.bf16.msra.mxu0 %v2716
  %2738 = vmatprep.subr.bf16.mxu0 0
  %2739 = vmatpush1.bf16.msra.mxu0 %v2717
  %2740 = vmatprep.subr.bf16.mxu0 0
  %2741 = vmatpush1.bf16.msra.mxu0 %v2718
  %2742 = vmatprep.subr.bf16.mxu0 0
  %2743 = vmatpush1.bf16.msra.mxu0 %v2719
  %2744 = vmatprep.subr.bf16.mxu0 0
  %2745 = vmatpush1.bf16.msra.mxu0 %v2732
  %2746 = vmatprep.subr.bf16.mxu0 0
  %2747 = vmatpush1.bf16.msra.mxu0 0
  %2748 = vmatprep.subr.bf16.mxu0 0
  %2749 = vmatpush1.bf16.msra.mxu0 0
  %2750 = vmatprep.subr.bf16.mxu0 0
  %2751 = vmatpush1.bf16.msra.mxu0 0
  %2752 = vmatprep.subr.bf16.mxu0 0
  %2753 = vmatpush1.bf16.msra.mxu0 0
  %2754 = vmatprep.subr.bf16.mxu0 0
  %2755 = vmatpush1.bf16.msra.mxu0 0
  %2756 = vmatprep.subr.bf16.mxu0 0
  %2757 = vmatpush1.bf16.msra.mxu0 0
  %2758 = vmatprep.subr.bf16.mxu0 0
  %2759 = vmatpush1.bf16.msra.mxu0 0
  %2760 = vmatprep.subr.bf16.mxu0 0
  %2761 = vmatpush1.bf16.msra.mxu0 0
  %2762 = vmatprep.subr.bf16.mxu0 0
  %2763 = vmatpush1.bf16.msra.mxu0 0
  %2764 = vmatprep.subr.bf16.mxu0 0
  %2765 = vmatpush1.bf16.msra.mxu0 0
  %2766 = vmatprep.mubr.bf16.mxu0 0
  %2767 = vmatmul.mubr.bf16.gmra.mrb[0].mxu0 %v2728
  %v2768 = vpop.f32.mrb[0].mxu0
  %v2769 = vadd.f32 %v2691, %v2768
  %v2770 = vpop.f32.mrb[0].mxu0
  %v2771 = vpop.f32.mrb[0].mxu0
  %v2772 = vpop.f32.mrb[0].mxu0
  %2773 = vdwg.mxu0
  %vm2774 = vcmask 23552
  %2775 = vst.msk [vmem:[%s11] sm:$0xff] %vm2774, %v2769
  // Predicated region
  $region46: #{lenet_forward.1} parent=0 // pred_check
    _
  $region47: #{lenet_forward.1} parent=0 // pred_check_branch
    %2777 = sbr.rel (0) target = $region49
  $region48: #{lenet_forward.1} parent=0 // pred_region
    _
  $region49: #{lenet_forward.1} parent=0 // pred_fallthru
    _
  // Predicated region
  $region50: #{lenet_forward.1} parent=0 // pred_check
    _
  $region51: #{lenet_forward.1} parent=0 // pred_check_branch
    %2779 = sbr.rel (0) target = $region53
  $region52: #{lenet_forward.1} parent=0 // pred_region
    _
  $region53: #{lenet_forward.1} parent=0 // pred_fallthru
    _

</llo_original>
